<compile_context>
chip_gen: v5e
topology: v5e:2x2
jax: 0.10.0
libtpu: 0.0.40
codegen_flags: <defaults>
</compile_context>

<pallas_src>
import functools

import jax
import jax.numpy as jnp
from jax import lax
from jax.experimental import pallas as pl
from jax.experimental.pallas import tpu as pltpu


def _round_up(x, m):
    return ((x + m - 1) // m) * m


def _sigmoid_via_tanh(z):
    # sigmoid(z) == 0.5 * (tanh(0.5*z) + 1): a single EUP transcendental.
    return 0.5 * (jnp.tanh(0.5 * z) + 1.0)


def _lstm_recurrent_kernel(
    xw_ref,      # (T_BLK, Bp, 4*Hp) bf16  precomputed x@W + b for this block
    u_ref,       # (Hp, 4*Hp)       bf16  fused recurrent weights [i|f|g|o]
    seq_out,     # (T_BLK, Bp, Hp)  f32   hidden state for every step in block
    c_out,       # (Bp, Hp)         f32   final cell state (last block only)
    h_sc, c_sc,  # VMEM f32 scratch: carried (h, c) across grid iterations
    *, t_blk, hp, seq_len, mask_tail,
):
    tb = pl.program_id(0)

    @pl.when(tb == 0)
    def _():
        h_sc[...] = jnp.zeros_like(h_sc)
        c_sc[...] = jnp.zeros_like(c_sc)

    def step(k, carry):
        h, c = carry
        # Single fused (Bp,Hp) x (Hp,4Hp) bf16 MXU matmul per timestep with
        # f32 accumulation; x-projection and bias were hoisted out.
        z = xw_ref[k].astype(jnp.float32) + jnp.dot(
            h.astype(jnp.bfloat16), u_ref[...],
            preferred_element_type=jnp.float32,
        )
        # Gate order [i | f | g | o]: c_new's inputs come off the MXU first.
        s_if = _sigmoid_via_tanh(z[:, : 2 * hp])          # [i | f] fused
        g_t = jnp.tanh(z[:, 2 * hp: 3 * hp])              # candidate cell
        o_t = _sigmoid_via_tanh(z[:, 3 * hp:])            # output gate
        i_t = s_if[:, :hp]
        f_t = s_if[:, hp:]
        c_new = f_t * c + i_t * g_t
        h_new = o_t * jnp.tanh(c_new)
        if mask_tail:
            # Hold the carry through padded steps of the last (partial) block.
            valid = (tb * t_blk + k) < seq_len
            h_new = jnp.where(valid, h_new, h)
            c_new = jnp.where(valid, c_new, c)
        seq_out[k] = h_new.astype(seq_out.dtype)
        return h_new, c_new

    h, c = lax.fori_loop(0, t_blk, step, (h_sc[...], c_sc[...]), unroll=True)
    h_sc[...] = h
    c_sc[...] = c

    @pl.when(tb == pl.num_programs(0) - 1)
    def _():
        c_out[...] = c.astype(c_out.dtype)


def lstm_forward(x, params, *, t_blk=32):
    """x: (batch, seq, input_size) float32. Returns (lstm_output, (h_t, c_t))."""
    batch, seq, input_size = x.shape
    hidden = params["w_i"].shape[1]

    bp = _round_up(batch, 8)        # sublane-aligned batch
    hp = _round_up(hidden, 128)     # lane-aligned hidden
    t_blk = min(t_blk, seq)
    seq_pad = _round_up(seq, t_blk)
    mask_tail = seq_pad != seq

    # ---- fuse + pad weights; gate order [i | f | g | o] ('c' is candidate g) ----
    def pad2(a, rows, cols):
        return jnp.pad(a, ((0, rows - a.shape[0]), (0, cols - a.shape[1])))

    gates = ("i", "f", "c", "o")
    w_all = jnp.concatenate(
        [pad2(params[f"w_{g}"], input_size, hp) for g in gates], axis=1
    )                                                       # (I, 4Hp) f32
    u_all = jnp.concatenate(
        [pad2(params[f"u_{g}"], hp, hp) for g in gates], axis=1
    ).astype(jnp.bfloat16)                                  # (Hp, 4Hp) bf16
    b_all = jnp.concatenate(
        [jnp.pad(params[f"b_{g}"], (0, hp - hidden)) for g in gates]
    )                                                       # (4Hp,) f32

    # ---- hoist x-projection out of the recurrence (parallel, MXU-friendly) ----
    # NOTE: computed in f32 (default TPU matmul precision), stored as bf16 --
    # the bf16 storage rounding dominates any matmul-precision difference.
    x_tm = jnp.transpose(x, (1, 0, 2))                      # (seq, B, I) time-major
    x_tm = jnp.pad(x_tm, ((0, seq_pad - seq), (0, bp - batch), (0, 0)))
    xw = (jnp.einsum("sbi,ih->sbh", x_tm, w_all) + b_all).astype(jnp.bfloat16)

    kernel = functools.partial(
        _lstm_recurrent_kernel, t_blk=t_blk, hp=hp, seq_len=seq, mask_tail=mask_tail
    )

    # ---- VMEM budget derived from the real buffers (safe for v7x's 64 MiB) ----
    xw_blk_bytes = t_blk * bp * 4 * hp * 2          # bf16 input block
    out_blk_bytes = t_blk * bp * hp * 4             # f32 seq_out block
    u_bytes = hp * 4 * hp * 2                       # bf16, single-buffered
    c_blk_bytes = bp * hp * 4
    scratch_bytes = 2 * bp * hp * 4
    vmem_need = (2 * xw_blk_bytes + 2 * out_blk_bytes + u_bytes
                 + 2 * c_blk_bytes + scratch_bytes)
    vmem_limit = int(min(max(2 * vmem_need + (4 << 20), 16 << 20), 64 << 20))

    out_p, c_p = pl.pallas_call(
        kernel,
        out_shape=(
            jax.ShapeDtypeStruct((seq_pad, bp, hp), jnp.float32),
            jax.ShapeDtypeStruct((bp, hp), jnp.float32),
        ),
        grid_spec=pltpu.PrefetchScalarGridSpec(
            num_scalar_prefetch=0,
            grid=(seq_pad // t_blk,),
            in_specs=[
                pl.BlockSpec((t_blk, bp, 4 * hp), lambda t: (t, 0, 0)),
                # Weights: constant block index -> single buffer is enough.
                pl.BlockSpec((hp, 4 * hp), lambda t: (0, 0),
                             pipeline_mode=pl.Buffered(1)),
            ],
            out_specs=(
                pl.BlockSpec((t_blk, bp, hp), lambda t: (t, 0, 0)),
                pl.BlockSpec((bp, hp), lambda t: (0, 0)),
            ),
            scratch_shapes=[
                pltpu.VMEM((bp, hp), jnp.float32),  # h carry
                pltpu.VMEM((bp, hp), jnp.float32),  # c carry
            ],
        ),
        compiler_params=pltpu.CompilerParams(
            dimension_semantics=("arbitrary",),  # sequential recurrence over time
            vmem_limit_bytes=vmem_limit,
        ),
    )(xw, u_all)

    lstm_output = out_p[:seq, :batch, :hidden]   # (seq, B, H)
    h_t = lstm_output[seq - 1]                   # final hidden == last step's output
    c_t = c_p[:batch, :hidden]
    return lstm_output, (h_t, c_t)


def lstm_reference(x, params):
    """Pure-JAX f32 reference mirroring the PyTorch forward exactly."""
    batch, seq, _ = x.shape
    hidden = params["w_i"].shape[1]
    h = jnp.zeros((batch, hidden), jnp.float32)
    c = jnp.zeros((batch, hidden), jnp.float32)
    hs = []
    for t in range(seq):
        xt = x[:, t, :]
        i_t = jax.nn.sigmoid(xt @ params["w_i"] + h @ params["u_i"] + params["b_i"])
        f_t = jax.nn.sigmoid(xt @ params["w_f"] + h @ params["u_f"] + params["b_f"])
        g_t = jnp.tanh(xt @ params["w_c"] + h @ params["u_c"] + params["b_c"])
        o_t = jax.nn.sigmoid(xt @ params["w_o"] + h @ params["u_o"] + params["b_o"])
        c = f_t * c + i_t * g_t
        h = o_t * jnp.tanh(c)
        hs.append(h)
    out = jnp.stack(hs, axis=0)  # == cat(dim=0).view(seq, batch, hidden)
    return out, (h, c)


def init_params(key, input_size, hidden_size):
    # NOTE: the PyTorch module uses stdv = 1/hidden**hidden (numerically ~0),
    # which makes the forward degenerate; we use 1/sqrt(hidden) so the kernel
    # exercises non-trivial values.  Initialization is synthetic/deterministic.
    stdv = 1.0 / (hidden_size ** 0.5)
    names = []
    for g in ("i", "f", "c", "o"):
        names += [f"w_{g}", f"u_{g}", f"b_{g}"]
    keys = jax.random.split(key, len(names))
    params = {}
    for name, k in zip(names, keys):
        if name.startswith("w_"):
            shape = (input_size, hidden_size)
        elif name.startswith("u_"):
            shape = (hidden_size, hidden_size)
        else:
            shape = (hidden_size,)
        params[name] = jax.random.uniform(
            k, shape, jnp.float32, minval=-stdv, maxval=stdv
        )
    return params


if __name__ == "__main__":
    batch, seq, input_size, hidden_size = 2, 8, 4, 32

    key = jax.random.PRNGKey(0)
    k_x, k_p = jax.random.split(key)
    x = jax.random.normal(k_x, (batch, seq, input_size), jnp.float32)
    params = init_params(k_p, input_size, hidden_size)

    out, (h_t, c_t) = jax.block_until_ready(lstm_forward(x, params))

    ref_out, (ref_h, ref_c) = lstm_reference(x, params)
    assert out.shape == (seq, batch, hidden_size)
    assert h_t.shape == (batch, hidden_size) and c_t.shape == (batch, hidden_size)
    # bf16 MXU operands / bf16 xw storage -> loosened tolerance vs. f32 reference.
    assert jnp.allclose(out, ref_out, atol=2e-2, rtol=2e-2)
    assert jnp.allclose(h_t, ref_h, atol=2e-2, rtol=2e-2)
    assert jnp.allclose(c_t, ref_c, atol=2e-2, rtol=2e-2)

    print("KERNEL_OK")
</pallas_src>

<mosaic_0001>
module attributes {stable_mosaic.version = 11 : i64} {
  func.func @_lstm_recurrent_kernel(%arg0: i32, %arg1: memref<8x8x512xbf16, #tpu.memory_space<vmem>>, %arg2: memref<128x512xbf16, #tpu.memory_space<vmem>>, %arg3: memref<8x8x128xf32, #tpu.memory_space<vmem>>, %arg4: memref<8x128xf32, #tpu.memory_space<vmem>>, %arg5: memref<8x128xf32, #tpu.memory_space<vmem>>, %arg6: memref<8x128xf32, #tpu.memory_space<vmem>>) attributes {dimension_semantics = [#tpu.dimension_semantics<arbitrary>], iteration_bounds = array<i64: 1>, scalar_prefetch = 0 : i64, scratch_operands = 2 : i64, tpu.core_type = #tpu.core_type<tc>, window_params = [{transform_indices = @transform_0, window_bounds = array<i64: 8, 8, 512>}, {pipeline_mode = #tpu.pipeline_mode<synchronous>, transform_indices = @transform_1, window_bounds = array<i64: 128, 512>}, {transform_indices = @transform_2, window_bounds = array<i64: 8, 8, 128>}, {pipeline_mode = #tpu.pipeline_mode<synchronous>, transform_indices = @transform_3, window_bounds = array<i64: 8, 128>}]} {
    %c0_i32 = arith.constant 0 : i32
    %0 = arith.cmpi eq, %arg0, %c0_i32 : i32
    %1 = arith.extui %0 : i1 to i32
    %c0_i32_0 = arith.constant 0 : i32
    %2 = arith.cmpi ne, %1, %c0_i32_0 : i32
    scf.if %2 {
      %cst_114 = arith.constant 0.000000e+00 : f32
      %306 = vector.broadcast %cst_114 : f32 to vector<8x128xf32>
      %c0_115 = arith.constant 0 : index
      %c0_116 = arith.constant 0 : index
      %307 = vector.load %arg5[%c0_115, %c0_116] : memref<8x128xf32, #tpu.memory_space<vmem>>, vector<8x128xf32>
      tpu.vector_store %arg5[%c0_115, %c0_116], %306 {strides = array<i32>} : memref<8x128xf32, #tpu.memory_space<vmem>>, vector<8x128xf32>,
      %cst_117 = arith.constant 0.000000e+00 : f32
      %308 = vector.broadcast %cst_117 : f32 to vector<8x128xf32>
      %c0_118 = arith.constant 0 : index
      %c0_119 = arith.constant 0 : index
      %309 = vector.load %arg6[%c0_118, %c0_119] : memref<8x128xf32, #tpu.memory_space<vmem>>, vector<8x128xf32>
      tpu.vector_store %arg6[%c0_118, %c0_119], %308 {strides = array<i32>} : memref<8x128xf32, #tpu.memory_space<vmem>>, vector<8x128xf32>,
    } else {
    }
    %c0 = arith.constant 0 : index
    %c0_1 = arith.constant 0 : index
    %3 = vector.load %arg5[%c0, %c0_1] : memref<8x128xf32, #tpu.memory_space<vmem>>, vector<8x128xf32>
    %c0_2 = arith.constant 0 : index
    %c0_3 = arith.constant 0 : index
    %4 = vector.load %arg6[%c0_2, %c0_3] : memref<8x128xf32, #tpu.memory_space<vmem>>, vector<8x128xf32>
    %c0_i32_4 = arith.constant 0 : i32
    %5 = arith.index_cast %c0_i32_4 : i32 to index
    %c0_5 = arith.constant 0 : index
    %c0_6 = arith.constant 0 : index
    %6 = vector.load %arg1[%5, %c0_5, %c0_6] : memref<8x8x512xbf16, #tpu.memory_space<vmem>>, vector<1x8x512xbf16>
    %7 = vector.shape_cast %6 : vector<1x8x512xbf16> to vector<8x512xbf16>
    %8 = arith.extf %7 : vector<8x512xbf16> to vector<8x512xf32>
    %9 = arith.truncf %3 : vector<8x128xf32> to vector<8x128xbf16>
    %c0_7 = arith.constant 0 : index
    %c0_8 = arith.constant 0 : index
    %10 = vector.load %arg2[%c0_7, %c0_8] : memref<128x512xbf16, #tpu.memory_space<vmem>>, vector<128x512xbf16>
    %cst = arith.constant dense<0.000000e+00> : vector<8x512xf32>
    %11 = tpu.matmul %9, %10, %cst {dimension_numbers = #tpu.dot_dimension_numbers<[1], [0], [0], [1], [0, 0, 1, 1], [], []>} : vector<8x128xbf16>, vector<128x512xbf16>, vector<8x512xf32> -> vector<8x512xf32>
    %12 = arith.addf %8, %11 : vector<8x512xf32>
    %13 = vector.extract_strided_slice %12 {offsets = [0, 0], sizes = [8, 256], strides = [1, 1]} : vector<8x512xf32> to vector<8x256xf32>
    %cst_9 = arith.constant 5.000000e-01 : f32
    %14 = vector.broadcast %cst_9 : f32 to vector<8x256xf32>
    %15 = arith.mulf %14, %13 : vector<8x256xf32>
    %16 = math.tanh %15 : vector<8x256xf32>
    %cst_10 = arith.constant 1.000000e+00 : f32
    %17 = vector.broadcast %cst_10 : f32 to vector<8x256xf32>
    %18 = arith.addf %16, %17 : vector<8x256xf32>
    %cst_11 = arith.constant 5.000000e-01 : f32
    %19 = vector.broadcast %cst_11 : f32 to vector<8x256xf32>
    %20 = arith.mulf %19, %18 : vector<8x256xf32>
    %21 = vector.extract_strided_slice %12 {offsets = [0, 256], sizes = [8, 128], strides = [1, 1]} : vector<8x512xf32> to vector<8x128xf32>
    %22 = math.tanh %21 : vector<8x128xf32>
    %23 = vector.extract_strided_slice %12 {offsets = [0, 384], sizes = [8, 128], strides = [1, 1]} : vector<8x512xf32> to vector<8x128xf32>
    %cst_12 = arith.constant 5.000000e-01 : f32
    %24 = vector.broadcast %cst_12 : f32 to vector<8x128xf32>
    %25 = arith.mulf %24, %23 : vector<8x128xf32>
    %26 = math.tanh %25 : vector<8x128xf32>
    %cst_13 = arith.constant 1.000000e+00 : f32
    %27 = vector.broadcast %cst_13 : f32 to vector<8x128xf32>
    %28 = arith.addf %26, %27 : vector<8x128xf32>
    %cst_14 = arith.constant 5.000000e-01 : f32
    %29 = vector.broadcast %cst_14 : f32 to vector<8x128xf32>
    %30 = arith.mulf %29, %28 : vector<8x128xf32>
    %31 = vector.extract_strided_slice %20 {offsets = [0, 0], sizes = [8, 128], strides = [1, 1]} : vector<8x256xf32> to vector<8x128xf32>
    %32 = vector.extract_strided_slice %20 {offsets = [0, 128], sizes = [8, 128], strides = [1, 1]} : vector<8x256xf32> to vector<8x128xf32>
    %33 = arith.mulf %32, %4 : vector<8x128xf32>
    %34 = arith.mulf %31, %22 : vector<8x128xf32>
    %35 = arith.addf %33, %34 : vector<8x128xf32>
    %36 = math.tanh %35 : vector<8x128xf32>
    %37 = arith.mulf %30, %36 : vector<8x128xf32>
    %38 = arith.index_cast %c0_i32_4 : i32 to index
    %c0_15 = arith.constant 0 : index
    %c0_16 = arith.constant 0 : index
    %39 = vector.load %arg3[%38, %c0_15, %c0_16] : memref<8x8x128xf32, #tpu.memory_space<vmem>>, vector<1x8x128xf32>
    %40 = vector.shape_cast %39 : vector<1x8x128xf32> to vector<8x128xf32>
    %41 = vector.shape_cast %37 : vector<8x128xf32> to vector<1x8x128xf32>
    tpu.vector_store %arg3[%38, %c0_15, %c0_16], %41 {strides = array<i32>} : memref<8x8x128xf32, #tpu.memory_space<vmem>>, vector<1x8x128xf32>,
    %c1_i32 = arith.constant 1 : i32
    %42 = arith.index_cast %c1_i32 : i32 to index
    %c0_17 = arith.constant 0 : index
    %c0_18 = arith.constant 0 : index
    %43 = vector.load %arg1[%42, %c0_17, %c0_18] : memref<8x8x512xbf16, #tpu.memory_space<vmem>>, vector<1x8x512xbf16>
    %44 = vector.shape_cast %43 : vector<1x8x512xbf16> to vector<8x512xbf16>
    %45 = arith.extf %44 : vector<8x512xbf16> to vector<8x512xf32>
    %46 = arith.truncf %37 : vector<8x128xf32> to vector<8x128xbf16>
    %c0_19 = arith.constant 0 : index
    %c0_20 = arith.constant 0 : index
    %47 = vector.load %arg2[%c0_19, %c0_20] : memref<128x512xbf16, #tpu.memory_space<vmem>>, vector<128x512xbf16>
    %cst_21 = arith.constant dense<0.000000e+00> : vector<8x512xf32>
    %48 = tpu.matmul %46, %47, %cst_21 {dimension_numbers = #tpu.dot_dimension_numbers<[1], [0], [0], [1], [0, 0, 1, 1], [], []>} : vector<8x128xbf16>, vector<128x512xbf16>, vector<8x512xf32> -> vector<8x512xf32>
    %49 = arith.addf %45, %48 : vector<8x512xf32>
    %50 = vector.extract_strided_slice %49 {offsets = [0, 0], sizes = [8, 256], strides = [1, 1]} : vector<8x512xf32> to vector<8x256xf32>
    %cst_22 = arith.constant 5.000000e-01 : f32
    %51 = vector.broadcast %cst_22 : f32 to vector<8x256xf32>
    %52 = arith.mulf %51, %50 : vector<8x256xf32>
    %53 = math.tanh %52 : vector<8x256xf32>
    %cst_23 = arith.constant 1.000000e+00 : f32
    %54 = vector.broadcast %cst_23 : f32 to vector<8x256xf32>
    %55 = arith.addf %53, %54 : vector<8x256xf32>
    %cst_24 = arith.constant 5.000000e-01 : f32
    %56 = vector.broadcast %cst_24 : f32 to vector<8x256xf32>
    %57 = arith.mulf %56, %55 : vector<8x256xf32>
    %58 = vector.extract_strided_slice %49 {offsets = [0, 256], sizes = [8, 128], strides = [1, 1]} : vector<8x512xf32> to vector<8x128xf32>
    %59 = math.tanh %58 : vector<8x128xf32>
    %60 = vector.extract_strided_slice %49 {offsets = [0, 384], sizes = [8, 128], strides = [1, 1]} : vector<8x512xf32> to vector<8x128xf32>
    %cst_25 = arith.constant 5.000000e-01 : f32
    %61 = vector.broadcast %cst_25 : f32 to vector<8x128xf32>
    %62 = arith.mulf %61, %60 : vector<8x128xf32>
    %63 = math.tanh %62 : vector<8x128xf32>
    %cst_26 = arith.constant 1.000000e+00 : f32
    %64 = vector.broadcast %cst_26 : f32 to vector<8x128xf32>
    %65 = arith.addf %63, %64 : vector<8x128xf32>
    %cst_27 = arith.constant 5.000000e-01 : f32
    %66 = vector.broadcast %cst_27 : f32 to vector<8x128xf32>
    %67 = arith.mulf %66, %65 : vector<8x128xf32>
    %68 = vector.extract_strided_slice %57 {offsets = [0, 0], sizes = [8, 128], strides = [1, 1]} : vector<8x256xf32> to vector<8x128xf32>
    %69 = vector.extract_strided_slice %57 {offsets = [0, 128], sizes = [8, 128], strides = [1, 1]} : vector<8x256xf32> to vector<8x128xf32>
    %70 = arith.mulf %69, %35 : vector<8x128xf32>
    %71 = arith.mulf %68, %59 : vector<8x128xf32>
    %72 = arith.addf %70, %71 : vector<8x128xf32>
    %73 = math.tanh %72 : vector<8x128xf32>
    %74 = arith.mulf %67, %73 : vector<8x128xf32>
    %75 = arith.index_cast %c1_i32 : i32 to index
    %c0_28 = arith.constant 0 : index
    %c0_29 = arith.constant 0 : index
    %76 = vector.load %arg3[%75, %c0_28, %c0_29] : memref<8x8x128xf32, #tpu.memory_space<vmem>>, vector<1x8x128xf32>
    %77 = vector.shape_cast %76 : vector<1x8x128xf32> to vector<8x128xf32>
    %78 = vector.shape_cast %74 : vector<8x128xf32> to vector<1x8x128xf32>
    tpu.vector_store %arg3[%75, %c0_28, %c0_29], %78 {strides = array<i32>} : memref<8x8x128xf32, #tpu.memory_space<vmem>>, vector<1x8x128xf32>,
    %c2_i32 = arith.constant 2 : i32
    %79 = arith.index_cast %c2_i32 : i32 to index
    %c0_30 = arith.constant 0 : index
    %c0_31 = arith.constant 0 : index
    %80 = vector.load %arg1[%79, %c0_30, %c0_31] : memref<8x8x512xbf16, #tpu.memory_space<vmem>>, vector<1x8x512xbf16>
    %81 = vector.shape_cast %80 : vector<1x8x512xbf16> to vector<8x512xbf16>
    %82 = arith.extf %81 : vector<8x512xbf16> to vector<8x512xf32>
    %83 = arith.truncf %74 : vector<8x128xf32> to vector<8x128xbf16>
    %c0_32 = arith.constant 0 : index
    %c0_33 = arith.constant 0 : index
    %84 = vector.load %arg2[%c0_32, %c0_33] : memref<128x512xbf16, #tpu.memory_space<vmem>>, vector<128x512xbf16>
    %cst_34 = arith.constant dense<0.000000e+00> : vector<8x512xf32>
    %85 = tpu.matmul %83, %84, %cst_34 {dimension_numbers = #tpu.dot_dimension_numbers<[1], [0], [0], [1], [0, 0, 1, 1], [], []>} : vector<8x128xbf16>, vector<128x512xbf16>, vector<8x512xf32> -> vector<8x512xf32>
    %86 = arith.addf %82, %85 : vector<8x512xf32>
    %87 = vector.extract_strided_slice %86 {offsets = [0, 0], sizes = [8, 256], strides = [1, 1]} : vector<8x512xf32> to vector<8x256xf32>
    %cst_35 = arith.constant 5.000000e-01 : f32
    %88 = vector.broadcast %cst_35 : f32 to vector<8x256xf32>
    %89 = arith.mulf %88, %87 : vector<8x256xf32>
    %90 = math.tanh %89 : vector<8x256xf32>
    %cst_36 = arith.constant 1.000000e+00 : f32
    %91 = vector.broadcast %cst_36 : f32 to vector<8x256xf32>
    %92 = arith.addf %90, %91 : vector<8x256xf32>
    %cst_37 = arith.constant 5.000000e-01 : f32
    %93 = vector.broadcast %cst_37 : f32 to vector<8x256xf32>
    %94 = arith.mulf %93, %92 : vector<8x256xf32>
    %95 = vector.extract_strided_slice %86 {offsets = [0, 256], sizes = [8, 128], strides = [1, 1]} : vector<8x512xf32> to vector<8x128xf32>
    %96 = math.tanh %95 : vector<8x128xf32>
    %97 = vector.extract_strided_slice %86 {offsets = [0, 384], sizes = [8, 128], strides = [1, 1]} : vector<8x512xf32> to vector<8x128xf32>
    %cst_38 = arith.constant 5.000000e-01 : f32
    %98 = vector.broadcast %cst_38 : f32 to vector<8x128xf32>
    %99 = arith.mulf %98, %97 : vector<8x128xf32>
    %100 = math.tanh %99 : vector<8x128xf32>
    %cst_39 = arith.constant 1.000000e+00 : f32
    %101 = vector.broadcast %cst_39 : f32 to vector<8x128xf32>
    %102 = arith.addf %100, %101 : vector<8x128xf32>
    %cst_40 = arith.constant 5.000000e-01 : f32
    %103 = vector.broadcast %cst_40 : f32 to vector<8x128xf32>
    %104 = arith.mulf %103, %102 : vector<8x128xf32>
    %105 = vector.extract_strided_slice %94 {offsets = [0, 0], sizes = [8, 128], strides = [1, 1]} : vector<8x256xf32> to vector<8x128xf32>
    %106 = vector.extract_strided_slice %94 {offsets = [0, 128], sizes = [8, 128], strides = [1, 1]} : vector<8x256xf32> to vector<8x128xf32>
    %107 = arith.mulf %106, %72 : vector<8x128xf32>
    %108 = arith.mulf %105, %96 : vector<8x128xf32>
    %109 = arith.addf %107, %108 : vector<8x128xf32>
    %110 = math.tanh %109 : vector<8x128xf32>
    %111 = arith.mulf %104, %110 : vector<8x128xf32>
    %112 = arith.index_cast %c2_i32 : i32 to index
    %c0_41 = arith.constant 0 : index
    %c0_42 = arith.constant 0 : index
    %113 = vector.load %arg3[%112, %c0_41, %c0_42] : memref<8x8x128xf32, #tpu.memory_space<vmem>>, vector<1x8x128xf32>
    %114 = vector.shape_cast %113 : vector<1x8x128xf32> to vector<8x128xf32>
    %115 = vector.shape_cast %111 : vector<8x128xf32> to vector<1x8x128xf32>
    tpu.vector_store %arg3[%112, %c0_41, %c0_42], %115 {strides = array<i32>} : memref<8x8x128xf32, #tpu.memory_space<vmem>>, vector<1x8x128xf32>,
    %c3_i32 = arith.constant 3 : i32
    %116 = arith.index_cast %c3_i32 : i32 to index
    %c0_43 = arith.constant 0 : index
    %c0_44 = arith.constant 0 : index
    %117 = vector.load %arg1[%116, %c0_43, %c0_44] : memref<8x8x512xbf16, #tpu.memory_space<vmem>>, vector<1x8x512xbf16>
    %118 = vector.shape_cast %117 : vector<1x8x512xbf16> to vector<8x512xbf16>
    %119 = arith.extf %118 : vector<8x512xbf16> to vector<8x512xf32>
    %120 = arith.truncf %111 : vector<8x128xf32> to vector<8x128xbf16>
    %c0_45 = arith.constant 0 : index
    %c0_46 = arith.constant 0 : index
    %121 = vector.load %arg2[%c0_45, %c0_46] : memref<128x512xbf16, #tpu.memory_space<vmem>>, vector<128x512xbf16>
    %cst_47 = arith.constant dense<0.000000e+00> : vector<8x512xf32>
    %122 = tpu.matmul %120, %121, %cst_47 {dimension_numbers = #tpu.dot_dimension_numbers<[1], [0], [0], [1], [0, 0, 1, 1], [], []>} : vector<8x128xbf16>, vector<128x512xbf16>, vector<8x512xf32> -> vector<8x512xf32>
    %123 = arith.addf %119, %122 : vector<8x512xf32>
    %124 = vector.extract_strided_slice %123 {offsets = [0, 0], sizes = [8, 256], strides = [1, 1]} : vector<8x512xf32> to vector<8x256xf32>
    %cst_48 = arith.constant 5.000000e-01 : f32
    %125 = vector.broadcast %cst_48 : f32 to vector<8x256xf32>
    %126 = arith.mulf %125, %124 : vector<8x256xf32>
    %127 = math.tanh %126 : vector<8x256xf32>
    %cst_49 = arith.constant 1.000000e+00 : f32
    %128 = vector.broadcast %cst_49 : f32 to vector<8x256xf32>
    %129 = arith.addf %127, %128 : vector<8x256xf32>
    %cst_50 = arith.constant 5.000000e-01 : f32
    %130 = vector.broadcast %cst_50 : f32 to vector<8x256xf32>
    %131 = arith.mulf %130, %129 : vector<8x256xf32>
    %132 = vector.extract_strided_slice %123 {offsets = [0, 256], sizes = [8, 128], strides = [1, 1]} : vector<8x512xf32> to vector<8x128xf32>
    %133 = math.tanh %132 : vector<8x128xf32>
    %134 = vector.extract_strided_slice %123 {offsets = [0, 384], sizes = [8, 128], strides = [1, 1]} : vector<8x512xf32> to vector<8x128xf32>
    %cst_51 = arith.constant 5.000000e-01 : f32
    %135 = vector.broadcast %cst_51 : f32 to vector<8x128xf32>
    %136 = arith.mulf %135, %134 : vector<8x128xf32>
    %137 = math.tanh %136 : vector<8x128xf32>
    %cst_52 = arith.constant 1.000000e+00 : f32
    %138 = vector.broadcast %cst_52 : f32 to vector<8x128xf32>
    %139 = arith.addf %137, %138 : vector<8x128xf32>
    %cst_53 = arith.constant 5.000000e-01 : f32
    %140 = vector.broadcast %cst_53 : f32 to vector<8x128xf32>
    %141 = arith.mulf %140, %139 : vector<8x128xf32>
    %142 = vector.extract_strided_slice %131 {offsets = [0, 0], sizes = [8, 128], strides = [1, 1]} : vector<8x256xf32> to vector<8x128xf32>
    %143 = vector.extract_strided_slice %131 {offsets = [0, 128], sizes = [8, 128], strides = [1, 1]} : vector<8x256xf32> to vector<8x128xf32>
    %144 = arith.mulf %143, %109 : vector<8x128xf32>
    %145 = arith.mulf %142, %133 : vector<8x128xf32>
    %146 = arith.addf %144, %145 : vector<8x128xf32>
    %147 = math.tanh %146 : vector<8x128xf32>
    %148 = arith.mulf %141, %147 : vector<8x128xf32>
    %149 = arith.index_cast %c3_i32 : i32 to index
    %c0_54 = arith.constant 0 : index
    %c0_55 = arith.constant 0 : index
    %150 = vector.load %arg3[%149, %c0_54, %c0_55] : memref<8x8x128xf32, #tpu.memory_space<vmem>>, vector<1x8x128xf32>
    %151 = vector.shape_cast %150 : vector<1x8x128xf32> to vector<8x128xf32>
    %152 = vector.shape_cast %148 : vector<8x128xf32> to vector<1x8x128xf32>
    tpu.vector_store %arg3[%149, %c0_54, %c0_55], %152 {strides = array<i32>} : memref<8x8x128xf32, #tpu.memory_space<vmem>>, vector<1x8x128xf32>,
    %c4_i32 = arith.constant 4 : i32
    %153 = arith.index_cast %c4_i32 : i32 to index
    %c0_56 = arith.constant 0 : index
    %c0_57 = arith.constant 0 : index
    %154 = vector.load %arg1[%153, %c0_56, %c0_57] : memref<8x8x512xbf16, #tpu.memory_space<vmem>>, vector<1x8x512xbf16>
    %155 = vector.shape_cast %154 : vector<1x8x512xbf16> to vector<8x512xbf16>
    %156 = arith.extf %155 : vector<8x512xbf16> to vector<8x512xf32>
    %157 = arith.truncf %148 : vector<8x128xf32> to vector<8x128xbf16>
    %c0_58 = arith.constant 0 : index
    %c0_59 = arith.constant 0 : index
    %158 = vector.load %arg2[%c0_58, %c0_59] : memref<128x512xbf16, #tpu.memory_space<vmem>>, vector<128x512xbf16>
    %cst_60 = arith.constant dense<0.000000e+00> : vector<8x512xf32>
    %159 = tpu.matmul %157, %158, %cst_60 {dimension_numbers = #tpu.dot_dimension_numbers<[1], [0], [0], [1], [0, 0, 1, 1], [], []>} : vector<8x128xbf16>, vector<128x512xbf16>, vector<8x512xf32> -> vector<8x512xf32>
    %160 = arith.addf %156, %159 : vector<8x512xf32>
    %161 = vector.extract_strided_slice %160 {offsets = [0, 0], sizes = [8, 256], strides = [1, 1]} : vector<8x512xf32> to vector<8x256xf32>
    %cst_61 = arith.constant 5.000000e-01 : f32
    %162 = vector.broadcast %cst_61 : f32 to vector<8x256xf32>
    %163 = arith.mulf %162, %161 : vector<8x256xf32>
    %164 = math.tanh %163 : vector<8x256xf32>
    %cst_62 = arith.constant 1.000000e+00 : f32
    %165 = vector.broadcast %cst_62 : f32 to vector<8x256xf32>
    %166 = arith.addf %164, %165 : vector<8x256xf32>
    %cst_63 = arith.constant 5.000000e-01 : f32
    %167 = vector.broadcast %cst_63 : f32 to vector<8x256xf32>
    %168 = arith.mulf %167, %166 : vector<8x256xf32>
    %169 = vector.extract_strided_slice %160 {offsets = [0, 256], sizes = [8, 128], strides = [1, 1]} : vector<8x512xf32> to vector<8x128xf32>
    %170 = math.tanh %169 : vector<8x128xf32>
    %171 = vector.extract_strided_slice %160 {offsets = [0, 384], sizes = [8, 128], strides = [1, 1]} : vector<8x512xf32> to vector<8x128xf32>
    %cst_64 = arith.constant 5.000000e-01 : f32
    %172 = vector.broadcast %cst_64 : f32 to vector<8x128xf32>
    %173 = arith.mulf %172, %171 : vector<8x128xf32>
    %174 = math.tanh %173 : vector<8x128xf32>
    %cst_65 = arith.constant 1.000000e+00 : f32
    %175 = vector.broadcast %cst_65 : f32 to vector<8x128xf32>
    %176 = arith.addf %174, %175 : vector<8x128xf32>
    %cst_66 = arith.constant 5.000000e-01 : f32
    %177 = vector.broadcast %cst_66 : f32 to vector<8x128xf32>
    %178 = arith.mulf %177, %176 : vector<8x128xf32>
    %179 = vector.extract_strided_slice %168 {offsets = [0, 0], sizes = [8, 128], strides = [1, 1]} : vector<8x256xf32> to vector<8x128xf32>
    %180 = vector.extract_strided_slice %168 {offsets = [0, 128], sizes = [8, 128], strides = [1, 1]} : vector<8x256xf32> to vector<8x128xf32>
    %181 = arith.mulf %180, %146 : vector<8x128xf32>
    %182 = arith.mulf %179, %170 : vector<8x128xf32>
    %183 = arith.addf %181, %182 : vector<8x128xf32>
    %184 = math.tanh %183 : vector<8x128xf32>
    %185 = arith.mulf %178, %184 : vector<8x128xf32>
    %186 = arith.index_cast %c4_i32 : i32 to index
    %c0_67 = arith.constant 0 : index
    %c0_68 = arith.constant 0 : index
    %187 = vector.load %arg3[%186, %c0_67, %c0_68] : memref<8x8x128xf32, #tpu.memory_space<vmem>>, vector<1x8x128xf32>
    %188 = vector.shape_cast %187 : vector<1x8x128xf32> to vector<8x128xf32>
    %189 = vector.shape_cast %185 : vector<8x128xf32> to vector<1x8x128xf32>
    tpu.vector_store %arg3[%186, %c0_67, %c0_68], %189 {strides = array<i32>} : memref<8x8x128xf32, #tpu.memory_space<vmem>>, vector<1x8x128xf32>,
    %c5_i32 = arith.constant 5 : i32
    %190 = arith.index_cast %c5_i32 : i32 to index
    %c0_69 = arith.constant 0 : index
    %c0_70 = arith.constant 0 : index
    %191 = vector.load %arg1[%190, %c0_69, %c0_70] : memref<8x8x512xbf16, #tpu.memory_space<vmem>>, vector<1x8x512xbf16>
    %192 = vector.shape_cast %191 : vector<1x8x512xbf16> to vector<8x512xbf16>
    %193 = arith.extf %192 : vector<8x512xbf16> to vector<8x512xf32>
    %194 = arith.truncf %185 : vector<8x128xf32> to vector<8x128xbf16>
    %c0_71 = arith.constant 0 : index
    %c0_72 = arith.constant 0 : index
    %195 = vector.load %arg2[%c0_71, %c0_72] : memref<128x512xbf16, #tpu.memory_space<vmem>>, vector<128x512xbf16>
    %cst_73 = arith.constant dense<0.000000e+00> : vector<8x512xf32>
    %196 = tpu.matmul %194, %195, %cst_73 {dimension_numbers = #tpu.dot_dimension_numbers<[1], [0], [0], [1], [0, 0, 1, 1], [], []>} : vector<8x128xbf16>, vector<128x512xbf16>, vector<8x512xf32> -> vector<8x512xf32>
    %197 = arith.addf %193, %196 : vector<8x512xf32>
    %198 = vector.extract_strided_slice %197 {offsets = [0, 0], sizes = [8, 256], strides = [1, 1]} : vector<8x512xf32> to vector<8x256xf32>
    %cst_74 = arith.constant 5.000000e-01 : f32
    %199 = vector.broadcast %cst_74 : f32 to vector<8x256xf32>
    %200 = arith.mulf %199, %198 : vector<8x256xf32>
    %201 = math.tanh %200 : vector<8x256xf32>
    %cst_75 = arith.constant 1.000000e+00 : f32
    %202 = vector.broadcast %cst_75 : f32 to vector<8x256xf32>
    %203 = arith.addf %201, %202 : vector<8x256xf32>
    %cst_76 = arith.constant 5.000000e-01 : f32
    %204 = vector.broadcast %cst_76 : f32 to vector<8x256xf32>
    %205 = arith.mulf %204, %203 : vector<8x256xf32>
    %206 = vector.extract_strided_slice %197 {offsets = [0, 256], sizes = [8, 128], strides = [1, 1]} : vector<8x512xf32> to vector<8x128xf32>
    %207 = math.tanh %206 : vector<8x128xf32>
    %208 = vector.extract_strided_slice %197 {offsets = [0, 384], sizes = [8, 128], strides = [1, 1]} : vector<8x512xf32> to vector<8x128xf32>
    %cst_77 = arith.constant 5.000000e-01 : f32
    %209 = vector.broadcast %cst_77 : f32 to vector<8x128xf32>
    %210 = arith.mulf %209, %208 : vector<8x128xf32>
    %211 = math.tanh %210 : vector<8x128xf32>
    %cst_78 = arith.constant 1.000000e+00 : f32
    %212 = vector.broadcast %cst_78 : f32 to vector<8x128xf32>
    %213 = arith.addf %211, %212 : vector<8x128xf32>
    %cst_79 = arith.constant 5.000000e-01 : f32
    %214 = vector.broadcast %cst_79 : f32 to vector<8x128xf32>
    %215 = arith.mulf %214, %213 : vector<8x128xf32>
    %216 = vector.extract_strided_slice %205 {offsets = [0, 0], sizes = [8, 128], strides = [1, 1]} : vector<8x256xf32> to vector<8x128xf32>
    %217 = vector.extract_strided_slice %205 {offsets = [0, 128], sizes = [8, 128], strides = [1, 1]} : vector<8x256xf32> to vector<8x128xf32>
    %218 = arith.mulf %217, %183 : vector<8x128xf32>
    %219 = arith.mulf %216, %207 : vector<8x128xf32>
    %220 = arith.addf %218, %219 : vector<8x128xf32>
    %221 = math.tanh %220 : vector<8x128xf32>
    %222 = arith.mulf %215, %221 : vector<8x128xf32>
    %223 = arith.index_cast %c5_i32 : i32 to index
    %c0_80 = arith.constant 0 : index
    %c0_81 = arith.constant 0 : index
    %224 = vector.load %arg3[%223, %c0_80, %c0_81] : memref<8x8x128xf32, #tpu.memory_space<vmem>>, vector<1x8x128xf32>
    %225 = vector.shape_cast %224 : vector<1x8x128xf32> to vector<8x128xf32>
    %226 = vector.shape_cast %222 : vector<8x128xf32> to vector<1x8x128xf32>
    tpu.vector_store %arg3[%223, %c0_80, %c0_81], %226 {strides = array<i32>} : memref<8x8x128xf32, #tpu.memory_space<vmem>>, vector<1x8x128xf32>,
    %c6_i32 = arith.constant 6 : i32
    %227 = arith.index_cast %c6_i32 : i32 to index
    %c0_82 = arith.constant 0 : index
    %c0_83 = arith.constant 0 : index
    %228 = vector.load %arg1[%227, %c0_82, %c0_83] : memref<8x8x512xbf16, #tpu.memory_space<vmem>>, vector<1x8x512xbf16>
    %229 = vector.shape_cast %228 : vector<1x8x512xbf16> to vector<8x512xbf16>
    %230 = arith.extf %229 : vector<8x512xbf16> to vector<8x512xf32>
    %231 = arith.truncf %222 : vector<8x128xf32> to vector<8x128xbf16>
    %c0_84 = arith.constant 0 : index
    %c0_85 = arith.constant 0 : index
    %232 = vector.load %arg2[%c0_84, %c0_85] : memref<128x512xbf16, #tpu.memory_space<vmem>>, vector<128x512xbf16>
    %cst_86 = arith.constant dense<0.000000e+00> : vector<8x512xf32>
    %233 = tpu.matmul %231, %232, %cst_86 {dimension_numbers = #tpu.dot_dimension_numbers<[1], [0], [0], [1], [0, 0, 1, 1], [], []>} : vector<8x128xbf16>, vector<128x512xbf16>, vector<8x512xf32> -> vector<8x512xf32>
    %234 = arith.addf %230, %233 : vector<8x512xf32>
    %235 = vector.extract_strided_slice %234 {offsets = [0, 0], sizes = [8, 256], strides = [1, 1]} : vector<8x512xf32> to vector<8x256xf32>
    %cst_87 = arith.constant 5.000000e-01 : f32
    %236 = vector.broadcast %cst_87 : f32 to vector<8x256xf32>
    %237 = arith.mulf %236, %235 : vector<8x256xf32>
    %238 = math.tanh %237 : vector<8x256xf32>
    %cst_88 = arith.constant 1.000000e+00 : f32
    %239 = vector.broadcast %cst_88 : f32 to vector<8x256xf32>
    %240 = arith.addf %238, %239 : vector<8x256xf32>
    %cst_89 = arith.constant 5.000000e-01 : f32
    %241 = vector.broadcast %cst_89 : f32 to vector<8x256xf32>
    %242 = arith.mulf %241, %240 : vector<8x256xf32>
    %243 = vector.extract_strided_slice %234 {offsets = [0, 256], sizes = [8, 128], strides = [1, 1]} : vector<8x512xf32> to vector<8x128xf32>
    %244 = math.tanh %243 : vector<8x128xf32>
    %245 = vector.extract_strided_slice %234 {offsets = [0, 384], sizes = [8, 128], strides = [1, 1]} : vector<8x512xf32> to vector<8x128xf32>
    %cst_90 = arith.constant 5.000000e-01 : f32
    %246 = vector.broadcast %cst_90 : f32 to vector<8x128xf32>
    %247 = arith.mulf %246, %245 : vector<8x128xf32>
    %248 = math.tanh %247 : vector<8x128xf32>
    %cst_91 = arith.constant 1.000000e+00 : f32
    %249 = vector.broadcast %cst_91 : f32 to vector<8x128xf32>
    %250 = arith.addf %248, %249 : vector<8x128xf32>
    %cst_92 = arith.constant 5.000000e-01 : f32
    %251 = vector.broadcast %cst_92 : f32 to vector<8x128xf32>
    %252 = arith.mulf %251, %250 : vector<8x128xf32>
    %253 = vector.extract_strided_slice %242 {offsets = [0, 0], sizes = [8, 128], strides = [1, 1]} : vector<8x256xf32> to vector<8x128xf32>
    %254 = vector.extract_strided_slice %242 {offsets = [0, 128], sizes = [8, 128], strides = [1, 1]} : vector<8x256xf32> to vector<8x128xf32>
    %255 = arith.mulf %254, %220 : vector<8x128xf32>
    %256 = arith.mulf %253, %244 : vector<8x128xf32>
    %257 = arith.addf %255, %256 : vector<8x128xf32>
    %258 = math.tanh %257 : vector<8x128xf32>
    %259 = arith.mulf %252, %258 : vector<8x128xf32>
    %260 = arith.index_cast %c6_i32 : i32 to index
    %c0_93 = arith.constant 0 : index
    %c0_94 = arith.constant 0 : index
    %261 = vector.load %arg3[%260, %c0_93, %c0_94] : memref<8x8x128xf32, #tpu.memory_space<vmem>>, vector<1x8x128xf32>
    %262 = vector.shape_cast %261 : vector<1x8x128xf32> to vector<8x128xf32>
    %263 = vector.shape_cast %259 : vector<8x128xf32> to vector<1x8x128xf32>
    tpu.vector_store %arg3[%260, %c0_93, %c0_94], %263 {strides = array<i32>} : memref<8x8x128xf32, #tpu.memory_space<vmem>>, vector<1x8x128xf32>,
    %c7_i32 = arith.constant 7 : i32
    %264 = arith.index_cast %c7_i32 : i32 to index
    %c0_95 = arith.constant 0 : index
    %c0_96 = arith.constant 0 : index
    %265 = vector.load %arg1[%264, %c0_95, %c0_96] : memref<8x8x512xbf16, #tpu.memory_space<vmem>>, vector<1x8x512xbf16>
    %266 = vector.shape_cast %265 : vector<1x8x512xbf16> to vector<8x512xbf16>
    %267 = arith.extf %266 : vector<8x512xbf16> to vector<8x512xf32>
    %268 = arith.truncf %259 : vector<8x128xf32> to vector<8x128xbf16>
    %c0_97 = arith.constant 0 : index
    %c0_98 = arith.constant 0 : index
    %269 = vector.load %arg2[%c0_97, %c0_98] : memref<128x512xbf16, #tpu.memory_space<vmem>>, vector<128x512xbf16>
    %cst_99 = arith.constant dense<0.000000e+00> : vector<8x512xf32>
    %270 = tpu.matmul %268, %269, %cst_99 {dimension_numbers = #tpu.dot_dimension_numbers<[1], [0], [0], [1], [0, 0, 1, 1], [], []>} : vector<8x128xbf16>, vector<128x512xbf16>, vector<8x512xf32> -> vector<8x512xf32>
    %271 = arith.addf %267, %270 : vector<8x512xf32>
    %272 = vector.extract_strided_slice %271 {offsets = [0, 0], sizes = [8, 256], strides = [1, 1]} : vector<8x512xf32> to vector<8x256xf32>
    %cst_100 = arith.constant 5.000000e-01 : f32
    %273 = vector.broadcast %cst_100 : f32 to vector<8x256xf32>
    %274 = arith.mulf %273, %272 : vector<8x256xf32>
    %275 = math.tanh %274 : vector<8x256xf32>
    %cst_101 = arith.constant 1.000000e+00 : f32
    %276 = vector.broadcast %cst_101 : f32 to vector<8x256xf32>
    %277 = arith.addf %275, %276 : vector<8x256xf32>
    %cst_102 = arith.constant 5.000000e-01 : f32
    %278 = vector.broadcast %cst_102 : f32 to vector<8x256xf32>
    %279 = arith.mulf %278, %277 : vector<8x256xf32>
    %280 = vector.extract_strided_slice %271 {offsets = [0, 256], sizes = [8, 128], strides = [1, 1]} : vector<8x512xf32> to vector<8x128xf32>
    %281 = math.tanh %280 : vector<8x128xf32>
    %282 = vector.extract_strided_slice %271 {offsets = [0, 384], sizes = [8, 128], strides = [1, 1]} : vector<8x512xf32> to vector<8x128xf32>
    %cst_103 = arith.constant 5.000000e-01 : f32
    %283 = vector.broadcast %cst_103 : f32 to vector<8x128xf32>
    %284 = arith.mulf %283, %282 : vector<8x128xf32>
    %285 = math.tanh %284 : vector<8x128xf32>
    %cst_104 = arith.constant 1.000000e+00 : f32
    %286 = vector.broadcast %cst_104 : f32 to vector<8x128xf32>
    %287 = arith.addf %285, %286 : vector<8x128xf32>
    %cst_105 = arith.constant 5.000000e-01 : f32
    %288 = vector.broadcast %cst_105 : f32 to vector<8x128xf32>
    %289 = arith.mulf %288, %287 : vector<8x128xf32>
    %290 = vector.extract_strided_slice %279 {offsets = [0, 0], sizes = [8, 128], strides = [1, 1]} : vector<8x256xf32> to vector<8x128xf32>
    %291 = vector.extract_strided_slice %279 {offsets = [0, 128], sizes = [8, 128], strides = [1, 1]} : vector<8x256xf32> to vector<8x128xf32>
    %292 = arith.mulf %291, %257 : vector<8x128xf32>
    %293 = arith.mulf %290, %281 : vector<8x128xf32>
    %294 = arith.addf %292, %293 : vector<8x128xf32>
    %295 = math.tanh %294 : vector<8x128xf32>
    %296 = arith.mulf %289, %295 : vector<8x128xf32>
    %297 = arith.index_cast %c7_i32 : i32 to index
    %c0_106 = arith.constant 0 : index
    %c0_107 = arith.constant 0 : index
    %298 = vector.load %arg3[%297, %c0_106, %c0_107] : memref<8x8x128xf32, #tpu.memory_space<vmem>>, vector<1x8x128xf32>
    %299 = vector.shape_cast %298 : vector<1x8x128xf32> to vector<8x128xf32>
    %300 = vector.shape_cast %296 : vector<8x128xf32> to vector<1x8x128xf32>
    tpu.vector_store %arg3[%297, %c0_106, %c0_107], %300 {strides = array<i32>} : memref<8x8x128xf32, #tpu.memory_space<vmem>>, vector<1x8x128xf32>,
    %c8_i32 = arith.constant 8 : i32
    %c0_108 = arith.constant 0 : index
    %c0_109 = arith.constant 0 : index
    %301 = vector.load %arg5[%c0_108, %c0_109] : memref<8x128xf32, #tpu.memory_space<vmem>>, vector<8x128xf32>
    tpu.vector_store %arg5[%c0_108, %c0_109], %296 {strides = array<i32>} : memref<8x128xf32, #tpu.memory_space<vmem>>, vector<8x128xf32>,
    %c0_110 = arith.constant 0 : index
    %c0_111 = arith.constant 0 : index
    %302 = vector.load %arg6[%c0_110, %c0_111] : memref<8x128xf32, #tpu.memory_space<vmem>>, vector<8x128xf32>
    tpu.vector_store %arg6[%c0_110, %c0_111], %294 {strides = array<i32>} : memref<8x128xf32, #tpu.memory_space<vmem>>, vector<8x128xf32>,
    %c0_i32_112 = arith.constant 0 : i32
    %303 = arith.cmpi eq, %arg0, %c0_i32_112 : i32
    %304 = arith.extui %303 : i1 to i32
    %c0_i32_113 = arith.constant 0 : i32
    %305 = arith.cmpi ne, %304, %c0_i32_113 : i32
    scf.if %305 {
      %c0_114 = arith.constant 0 : index
      %c0_115 = arith.constant 0 : index
      %306 = vector.load %arg4[%c0_114, %c0_115] : memref<8x128xf32, #tpu.memory_space<vmem>>, vector<8x128xf32>
      tpu.vector_store %arg4[%c0_114, %c0_115], %294 {strides = array<i32>} : memref<8x128xf32, #tpu.memory_space<vmem>>, vector<8x128xf32>,
    } else {
    }
    return
  }
  func.func @transform_0(%arg0: i32) -> (i32, i32, i32) {
    %c0_i32 = arith.constant 0 : i32
    %c0_i32_0 = arith.constant 0 : i32
    %c0_i32_1 = arith.constant 0 : i32
    return %arg0, %c0_i32, %c0_i32_0 : i32, i32, i32
  }
  func.func @transform_1(%arg0: i32) -> (i32, i32) {
    %c0_i32 = arith.constant 0 : i32
    %c0_i32_0 = arith.constant 0 : i32
    %c0_i32_1 = arith.constant 0 : i32
    return %c0_i32, %c0_i32_0 : i32, i32
  }
  func.func @transform_2(%arg0: i32) -> (i32, i32, i32) {
    %c0_i32 = arith.constant 0 : i32
    %c0_i32_0 = arith.constant 0 : i32
    %c0_i32_1 = arith.constant 0 : i32
    return %arg0, %c0_i32, %c0_i32_0 : i32, i32, i32
  }
  func.func @transform_3(%arg0: i32) -> (i32, i32) {
    %c0_i32 = arith.constant 0 : i32
    %c0_i32_0 = arith.constant 0 : i32
    %c0_i32_1 = arith.constant 0 : i32
    return %c0_i32, %c0_i32_0 : i32, i32
  }
}

</mosaic_0001>

<llo_original>
// kernel: tpu_custom_call.1
$region0: #{tpu_custom_call.1}
  #allocation0 [shape = 'u32[]', space=smem, size = 0x4, offset = 0x4, fixed_abs, tag = 'smem constant byte address 0x4 - core index']
  #allocation1 [shape = 'u32[72,128]{1,0:T(1,128)}', space=vmem, size = 0x9000, scoped, tag = 'internal scratch']
  #allocation2 [shape = 'f32[8,128]{1,0:T(8,128)}', space=vmem, size = 0x1000, scoped, tag = 'scratch operand']
  #allocation3 [shape = 'f32[8,128]{1,0:T(8,128)}', space=vmem, size = 0x1000, scoped, tag = 'scratch operand']
  %s0 = inlined_call_operand.hbm [shape: bf16[8,8,512], index: 0, kind: input, shape index: {}]
  %s1 = inlined_call_operand.hbm [shape: bf16[128,512], index: 1, kind: input, shape index: {}]
  %s2 = inlined_call_operand.hbm [shape: f32[8,8,128], index: 2, kind: output, shape index: {0}]
  %s3 = inlined_call_operand.hbm [shape: f32[8,128], index: 3, kind: output, shape index: {1}]
  %4 = xla_tuple %s2, %s3
  %s5 = sld [smem:[#allocation0]]
  $region42: #{tpu_custom_call.1} parent=0
    _
  %s7 = ssub.s32 1, %s5
  %s8 = scalar_select 0, %s7, %s5
  $region1: #{tpu_custom_call.1} parent=0
    #allocation4 [shape = 'u8[65536]{0}', space=vmem, size = 0x10000, scoped, tag = 'input window, operand 0, single buffered']
    #allocation5 [shape = 's32[1]{0}', space=sflag, size = 0x4, scoped, tag = 'scoped memory for tpu_custom_call.1']
    #allocation6 [shape = 's32[1]{0}', space=sflag, size = 0x4, scoped, tag = 'scoped memory for tpu_custom_call.1']
    #allocation7 [shape = 'u8[131072]{0}', space=vmem, size = 0x20000, scoped, tag = 'input window, operand 1, single buffered']
    #allocation8 [shape = 's32[1]{0}', space=sflag, size = 0x4, scoped, tag = 'scoped memory for tpu_custom_call.1']
    #allocation9 [shape = 'u8[32768]{0}', space=vmem, size = 0x8000, scoped, tag = 'output window, operand 0, single buffered']
    #allocation10 [shape = 'u8[4096]{0}', space=vmem, size = 0x1000, scoped, tag = 'output window, operand 1, single buffered']
    #allocation11 [shape = 's32[1]{0}', space=sflag, size = 0x4, scoped, tag = 'scoped memory for tpu_custom_call.1']
    %9 = vsyncpa [#allocation5], 0
    %10 = vsyncpa [#allocation8], 0
    %11 = vsyncpa [#allocation6], 0
    %12 = vsyncpa [#allocation11], 0
    // Predicated region
    $region2: #{tpu_custom_call.1} parent=1 // pred_check
      _
    $region3: #{tpu_custom_call.1} parent=1 // pred_check_branch
      %14 = sbr.rel (0) target = $region5
    $region4: #{tpu_custom_call.1} parent=1 // pred_region
      %16 = vsyncadd [#allocation5], 0
      %s17 = sshll.u32 %s0, 4
      %s18 = int_to_ptr.hbm [resolvable:$true] %s17
      %s19 = sshll.u32 [#allocation4], 4
      %s20 = int_to_ptr.vmem [resolvable:$true] %s19
      %25 = dma.hbm_to_vmem [thread:$0]  %s18, 2048, %s20, [#allocation5], 256, 256, 16
    $region5: #{tpu_custom_call.1} parent=1 // pred_fallthru
      _
    // Predicated region
    $region6: #{tpu_custom_call.1} parent=1 // pred_check
      _
    $region7: #{tpu_custom_call.1} parent=1 // pred_check_branch
      %27 = sbr.rel (0) target = $region9
    $region8: #{tpu_custom_call.1} parent=1 // pred_region
      %29 = vsyncadd [#allocation8], 0
      %s30 = sshll.u32 %s1, 4
      %s31 = int_to_ptr.hbm [resolvable:$true] %s30
      %s32 = sshll.u32 [#allocation7], 4
      %s33 = int_to_ptr.vmem [resolvable:$true] %s32
      %38 = dma.hbm_to_vmem [thread:$0]  %s31, 4096, %s33, [#allocation8], 256, 256, 16
    $region9: #{tpu_custom_call.1} parent=1 // pred_fallthru
      _
    // Predicated region
    $region10: #{tpu_custom_call.1} parent=1 // pred_check
      _
    $region11: #{tpu_custom_call.1} parent=1 // pred_check_branch
      %40 = sbr.rel (0) target = $region13
    $region12: #{tpu_custom_call.1} parent=1 // pred_region
      %42 = dma.done [#allocation5], 2048
    $region13: #{tpu_custom_call.1} parent=1 // pred_fallthru
      _
    // Predicated region
    $region14: #{tpu_custom_call.1} parent=1 // pred_check
      _
    $region15: #{tpu_custom_call.1} parent=1 // pred_check_branch
      %44 = sbr.rel (0) target = $region17
    $region16: #{tpu_custom_call.1} parent=1 // pred_region
      %46 = dma.done [#allocation8], 4096
    $region17: #{tpu_custom_call.1} parent=1 // pred_fallthru
      _
    %p47 = scmp.eq.s32.totalorder 0, 0
    // Predicated region
    $region18: #{tpu_custom_call.1} parent=1 // pred_check
      %p48 = pneg %p47
    $region19: #{tpu_custom_call.1} parent=1 // pred_check_branch
      %50 = sbr.rel (%p48) target = $region21
    $region20: #{tpu_custom_call.1} parent=1 // pred_region
      %51 = vst [vmem:[#allocation2] sm:$0xff] 0.0
      %52 = vst [vmem:[#allocation3] sm:$0xff] 0.0
    $region21: #{tpu_custom_call.1} parent=1 // pred_fallthru
      _
    %v53 = vld [vmem:[#allocation2] sm:$0xff]
    %v54 = vld [vmem:[#allocation3] sm:$0xff]
    %v55 = vld [vmem:[#allocation4] sm:$0xff]
    %v56 = vld [vmem:[#allocation4 + $0x8] sm:$0xff]
    %v57 = vunpack.c.l.bf16 %v55
    %v58 = vunpack.c.h.bf16 %v55
    %v59 = vunpack.c.l.bf16 %v56
    %v60 = vunpack.c.h.bf16 %v56
    %v61 = vpack.c.bf16 %v53, %v53
    %v62 = vld [vmem:[#allocation7] sm:$0xff]
    %v63 = vld [vmem:[#allocation7 + $0x8] sm:$0xff]
    %v64 = vld [vmem:[#allocation7 + $0x10] sm:$0xff]
    %v65 = vld [vmem:[#allocation7 + $0x18] sm:$0xff]
    %v66 = vld [vmem:[#allocation7 + $0x20] sm:$0xff]
    %v67 = vld [vmem:[#allocation7 + $0x28] sm:$0xff]
    %v68 = vld [vmem:[#allocation7 + $0x30] sm:$0xff]
    %v69 = vld [vmem:[#allocation7 + $0x38] sm:$0xff]
    %v70 = vld [vmem:[#allocation7 + $0x40] sm:$0xff]
    %v71 = vld [vmem:[#allocation7 + $0x48] sm:$0xff]
    %v72 = vld [vmem:[#allocation7 + $0x50] sm:$0xff]
    %v73 = vld [vmem:[#allocation7 + $0x58] sm:$0xff]
    %v74 = vld [vmem:[#allocation7 + $0x60] sm:$0xff]
    %v75 = vld [vmem:[#allocation7 + $0x68] sm:$0xff]
    %v76 = vld [vmem:[#allocation7 + $0x70] sm:$0xff]
    %v77 = vld [vmem:[#allocation7 + $0x78] sm:$0xff]
    %v78 = vld [vmem:[#allocation7 + $0x80] sm:$0xff]
    %v79 = vld [vmem:[#allocation7 + $0x88] sm:$0xff]
    %v80 = vld [vmem:[#allocation7 + $0x90] sm:$0xff]
    %v81 = vld [vmem:[#allocation7 + $0x98] sm:$0xff]
    %v82 = vld [vmem:[#allocation7 + $0xa0] sm:$0xff]
    %v83 = vld [vmem:[#allocation7 + $0xa8] sm:$0xff]
    %v84 = vld [vmem:[#allocation7 + $0xb0] sm:$0xff]
    %v85 = vld [vmem:[#allocation7 + $0xb8] sm:$0xff]
    %v86 = vld [vmem:[#allocation7 + $0xc0] sm:$0xff]
    %v87 = vld [vmem:[#allocation7 + $0xc8] sm:$0xff]
    %v88 = vld [vmem:[#allocation7 + $0xd0] sm:$0xff]
    %v89 = vld [vmem:[#allocation7 + $0xd8] sm:$0xff]
    %v90 = vld [vmem:[#allocation7 + $0xe0] sm:$0xff]
    %v91 = vld [vmem:[#allocation7 + $0xe8] sm:$0xff]
    %v92 = vld [vmem:[#allocation7 + $0xf0] sm:$0xff]
    %v93 = vld [vmem:[#allocation7 + $0xf8] sm:$0xff]
    %v126 = vunpack.c.l.b16 %v62
    %v127 = vunpack.c.h.b16 %v62
    %v128 = vunpack.c.l.b16 %v63
    %v129 = vunpack.c.h.b16 %v63
    %v130 = vunpack.c.l.b16 %v64
    %v131 = vunpack.c.h.b16 %v64
    %v132 = vunpack.c.l.b16 %v65
    %v133 = vunpack.c.h.b16 %v65
    %v134 = vunpack.c.l.b16 %v66
    %v135 = vunpack.c.h.b16 %v66
    %v136 = vunpack.c.l.b16 %v67
    %v137 = vunpack.c.h.b16 %v67
    %v138 = vunpack.c.l.b16 %v68
    %v139 = vunpack.c.h.b16 %v68
    %v140 = vunpack.c.l.b16 %v69
    %v141 = vunpack.c.h.b16 %v69
    %v142 = vunpack.c.l.b16 %v70
    %v143 = vunpack.c.h.b16 %v70
    %v144 = vunpack.c.l.b16 %v71
    %v145 = vunpack.c.h.b16 %v71
    %v146 = vunpack.c.l.b16 %v72
    %v147 = vunpack.c.h.b16 %v72
    %v148 = vunpack.c.l.b16 %v73
    %v149 = vunpack.c.h.b16 %v73
    %v150 = vunpack.c.l.b16 %v74
    %v151 = vunpack.c.h.b16 %v74
    %v152 = vunpack.c.l.b16 %v75
    %v153 = vunpack.c.h.b16 %v75
    %v154 = vunpack.c.l.b16 %v76
    %v155 = vunpack.c.h.b16 %v76
    %v156 = vunpack.c.l.b16 %v77
    %v157 = vunpack.c.h.b16 %v77
    %v158 = vunpack.c.l.b16 %v78
    %v159 = vunpack.c.h.b16 %v78
    %v160 = vunpack.c.l.b16 %v79
    %v161 = vunpack.c.h.b16 %v79
    %v162 = vunpack.c.l.b16 %v80
    %v163 = vunpack.c.h.b16 %v80
    %v164 = vunpack.c.l.b16 %v81
    %v165 = vunpack.c.h.b16 %v81
    %v166 = vunpack.c.l.b16 %v82
    %v167 = vunpack.c.h.b16 %v82
    %v168 = vunpack.c.l.b16 %v83
    %v169 = vunpack.c.h.b16 %v83
    %v170 = vunpack.c.l.b16 %v84
    %v171 = vunpack.c.h.b16 %v84
    %v172 = vunpack.c.l.b16 %v85
    %v173 = vunpack.c.h.b16 %v85
    %v174 = vunpack.c.l.b16 %v86
    %v175 = vunpack.c.h.b16 %v86
    %v176 = vunpack.c.l.b16 %v87
    %v177 = vunpack.c.h.b16 %v87
    %v178 = vunpack.c.l.b16 %v88
    %v179 = vunpack.c.h.b16 %v88
    %v180 = vunpack.c.l.b16 %v89
    %v181 = vunpack.c.h.b16 %v89
    %v182 = vunpack.c.l.b16 %v90
    %v183 = vunpack.c.h.b16 %v90
    %v184 = vunpack.c.l.b16 %v91
    %v185 = vunpack.c.h.b16 %v91
    %v186 = vunpack.c.l.b16 %v92
    %v187 = vunpack.c.h.b16 %v92
    %v188 = vunpack.c.l.b16 %v93
    %v189 = vunpack.c.h.b16 %v93
    %v190 = vpack.c.b16 %v130, %v126
    %v191 = vpack.c.b16 %v131, %v127
    %v192 = vpack.c.b16 %v132, %v128
    %v193 = vpack.c.b16 %v133, %v129
    %v194 = vpack.c.b16 %v138, %v134
    %v195 = vpack.c.b16 %v139, %v135
    %v196 = vpack.c.b16 %v140, %v136
    %v197 = vpack.c.b16 %v141, %v137
    %v198 = vpack.c.b16 %v146, %v142
    %v199 = vpack.c.b16 %v147, %v143
    %v200 = vpack.c.b16 %v148, %v144
    %v201 = vpack.c.b16 %v149, %v145
    %v202 = vpack.c.b16 %v154, %v150
    %v203 = vpack.c.b16 %v155, %v151
    %v204 = vpack.c.b16 %v156, %v152
    %v205 = vpack.c.b16 %v157, %v153
    %v206 = vpack.c.b16 %v162, %v158
    %v207 = vpack.c.b16 %v163, %v159
    %v208 = vpack.c.b16 %v164, %v160
    %v209 = vpack.c.b16 %v165, %v161
    %v210 = vpack.c.b16 %v170, %v166
    %v211 = vpack.c.b16 %v171, %v167
    %v212 = vpack.c.b16 %v172, %v168
    %v213 = vpack.c.b16 %v173, %v169
    %v214 = vpack.c.b16 %v178, %v174
    %v215 = vpack.c.b16 %v179, %v175
    %v216 = vpack.c.b16 %v180, %v176
    %v217 = vpack.c.b16 %v181, %v177
    %v218 = vpack.c.b16 %v186, %v182
    %v219 = vpack.c.b16 %v187, %v183
    %v220 = vpack.c.b16 %v188, %v184
    %v221 = vpack.c.b16 %v189, %v185
    %254 = vmatpush.bf16.msra.mxu0 %v218
    %255 = vmatpush.bf16.msra.mxu0 %v214
    %256 = vmatpush.bf16.msra.mxu0 %v210
    %257 = vmatpush.bf16.msra.mxu0 %v206
    %258 = vmatpush.bf16.msra.mxu0 %v202
    %259 = vmatpush.bf16.msra.mxu0 %v198
    %260 = vmatpush.bf16.msra.mxu0 %v194
    %261 = vmatpush.bf16.msra.mxu0 %v190
    %262 = vmatmul.bf16.gmra.mxu0 %v61
    %v263 = vpop.f32.mrf.mxu0
    %v264 = vadd.f32 0.0, %v263
    %v265 = vpop.f32.mrf.mxu0
    %266 = vdwg.mxu0
    %267 = vmatpush.bf16.msra.mxu0 %v219
    %268 = vmatpush.bf16.msra.mxu0 %v215
    %269 = vmatpush.bf16.msra.mxu0 %v211
    %270 = vmatpush.bf16.msra.mxu0 %v207
    %271 = vmatpush.bf16.msra.mxu0 %v203
    %272 = vmatpush.bf16.msra.mxu0 %v199
    %273 = vmatpush.bf16.msra.mxu0 %v195
    %274 = vmatpush.bf16.msra.mxu0 %v191
    %275 = vmatmul.bf16.gmra.mxu0 %v61
    %v276 = vpop.f32.mrf.mxu0
    %v277 = vadd.f32 0.0, %v276
    %v278 = vpop.f32.mrf.mxu0
    %279 = vdwg.mxu0
    %280 = vmatpush.bf16.msra.mxu0 %v220
    %281 = vmatpush.bf16.msra.mxu0 %v216
    %282 = vmatpush.bf16.msra.mxu0 %v212
    %283 = vmatpush.bf16.msra.mxu0 %v208
    %284 = vmatpush.bf16.msra.mxu0 %v204
    %285 = vmatpush.bf16.msra.mxu0 %v200
    %286 = vmatpush.bf16.msra.mxu0 %v196
    %287 = vmatpush.bf16.msra.mxu0 %v192
    %288 = vmatmul.bf16.gmra.mxu0 %v61
    %v289 = vpop.f32.mrf.mxu0
    %v290 = vadd.f32 0.0, %v289
    %v291 = vpop.f32.mrf.mxu0
    %292 = vdwg.mxu0
    %293 = vmatpush.bf16.msra.mxu0 %v221
    %294 = vmatpush.bf16.msra.mxu0 %v217
    %295 = vmatpush.bf16.msra.mxu0 %v213
    %296 = vmatpush.bf16.msra.mxu0 %v209
    %297 = vmatpush.bf16.msra.mxu0 %v205
    %298 = vmatpush.bf16.msra.mxu0 %v201
    %299 = vmatpush.bf16.msra.mxu0 %v197
    %300 = vmatpush.bf16.msra.mxu0 %v193
    %301 = vmatmul.bf16.gmra.mxu0 %v61
    %v302 = vpop.f32.mrf.mxu0
    %v303 = vadd.f32 0.0, %v302
    %v304 = vpop.f32.mrf.mxu0
    %305 = vdwg.mxu0
    %v306 = vadd.f32 %v57, %v264
    %v307 = vadd.f32 %v58, %v277
    %v308 = vadd.f32 %v59, %v290
    %v309 = vadd.f32 %v60, %v303
    %v310 = vmul.f32 %v306, 0.5
    %v311 = vmul.f32 %v307, 0.5
    %v312 = vtanh.pop %v310
    %v313 = vtanh.pop %v311
    %v314 = vadd.f32 %v312, 1.0
    %v315 = vadd.f32 %v313, 1.0
    %v316 = vmul.f32 %v314, 0.5
    %v317 = vmul.f32 %v315, 0.5
    %v318 = vtanh.pop %v308
    %v319 = vmul.f32 %v309, 0.5
    %v320 = vtanh.pop %v319
    %v321 = vadd.f32 %v320, 1.0
    %v322 = vmul.f32 %v321, 0.5
    %v323 = vmul.f32 %v317, %v54
    %v324 = vmul.f32 %v316, %v318
    %v325 = vadd.f32 %v323, %v324
    %v326 = vtanh.pop %v325
    %v327 = vmul.f32 %v322, %v326
    %328 = vst [vmem:[#allocation9] sm:$0xff] %v327
    %s329 = scalar_lea.vmem [#allocation4], 16
    %v330 = vld [vmem:[%s329] sm:$0xff]
    %v331 = vld [vmem:[%s329 + $0x8] sm:$0xff]
    %v332 = vunpack.c.l.bf16 %v330
    %v333 = vunpack.c.h.bf16 %v330
    %v334 = vunpack.c.l.bf16 %v331
    %v335 = vunpack.c.h.bf16 %v331
    %v336 = vpack.c.bf16 %v327, %v327
    %v337 = vld [vmem:[#allocation7] sm:$0xff]
    %v338 = vld [vmem:[#allocation7 + $0x8] sm:$0xff]
    %v339 = vld [vmem:[#allocation7 + $0x10] sm:$0xff]
    %v340 = vld [vmem:[#allocation7 + $0x18] sm:$0xff]
    %v341 = vld [vmem:[#allocation7 + $0x20] sm:$0xff]
    %v342 = vld [vmem:[#allocation7 + $0x28] sm:$0xff]
    %v343 = vld [vmem:[#allocation7 + $0x30] sm:$0xff]
    %v344 = vld [vmem:[#allocation7 + $0x38] sm:$0xff]
    %v345 = vld [vmem:[#allocation7 + $0x40] sm:$0xff]
    %v346 = vld [vmem:[#allocation7 + $0x48] sm:$0xff]
    %v347 = vld [vmem:[#allocation7 + $0x50] sm:$0xff]
    %v348 = vld [vmem:[#allocation7 + $0x58] sm:$0xff]
    %v349 = vld [vmem:[#allocation7 + $0x60] sm:$0xff]
    %v350 = vld [vmem:[#allocation7 + $0x68] sm:$0xff]
    %v351 = vld [vmem:[#allocation7 + $0x70] sm:$0xff]
    %v352 = vld [vmem:[#allocation7 + $0x78] sm:$0xff]
    %v353 = vld [vmem:[#allocation7 + $0x80] sm:$0xff]
    %v354 = vld [vmem:[#allocation7 + $0x88] sm:$0xff]
    %v355 = vld [vmem:[#allocation7 + $0x90] sm:$0xff]
    %v356 = vld [vmem:[#allocation7 + $0x98] sm:$0xff]
    %v357 = vld [vmem:[#allocation7 + $0xa0] sm:$0xff]
    %v358 = vld [vmem:[#allocation7 + $0xa8] sm:$0xff]
    %v359 = vld [vmem:[#allocation7 + $0xb0] sm:$0xff]
    %v360 = vld [vmem:[#allocation7 + $0xb8] sm:$0xff]
    %v361 = vld [vmem:[#allocation7 + $0xc0] sm:$0xff]
    %v362 = vld [vmem:[#allocation7 + $0xc8] sm:$0xff]
    %v363 = vld [vmem:[#allocation7 + $0xd0] sm:$0xff]
    %v364 = vld [vmem:[#allocation7 + $0xd8] sm:$0xff]
    %v365 = vld [vmem:[#allocation7 + $0xe0] sm:$0xff]
    %v366 = vld [vmem:[#allocation7 + $0xe8] sm:$0xff]
    %v367 = vld [vmem:[#allocation7 + $0xf0] sm:$0xff]
    %v368 = vld [vmem:[#allocation7 + $0xf8] sm:$0xff]
    %v401 = vunpack.c.l.b16 %v337
    %v402 = vunpack.c.h.b16 %v337
    %v403 = vunpack.c.l.b16 %v338
    %v404 = vunpack.c.h.b16 %v338
    %v405 = vunpack.c.l.b16 %v339
    %v406 = vunpack.c.h.b16 %v339
    %v407 = vunpack.c.l.b16 %v340
    %v408 = vunpack.c.h.b16 %v340
    %v409 = vunpack.c.l.b16 %v341
    %v410 = vunpack.c.h.b16 %v341
    %v411 = vunpack.c.l.b16 %v342
    %v412 = vunpack.c.h.b16 %v342
    %v413 = vunpack.c.l.b16 %v343
    %v414 = vunpack.c.h.b16 %v343
    %v415 = vunpack.c.l.b16 %v344
    %v416 = vunpack.c.h.b16 %v344
    %v417 = vunpack.c.l.b16 %v345
    %v418 = vunpack.c.h.b16 %v345
    %v419 = vunpack.c.l.b16 %v346
    %v420 = vunpack.c.h.b16 %v346
    %v421 = vunpack.c.l.b16 %v347
    %v422 = vunpack.c.h.b16 %v347
    %v423 = vunpack.c.l.b16 %v348
    %v424 = vunpack.c.h.b16 %v348
    %v425 = vunpack.c.l.b16 %v349
    %v426 = vunpack.c.h.b16 %v349
    %v427 = vunpack.c.l.b16 %v350
    %v428 = vunpack.c.h.b16 %v350
    %v429 = vunpack.c.l.b16 %v351
    %v430 = vunpack.c.h.b16 %v351
    %v431 = vunpack.c.l.b16 %v352
    %v432 = vunpack.c.h.b16 %v352
    %v433 = vunpack.c.l.b16 %v353
    %v434 = vunpack.c.h.b16 %v353
    %v435 = vunpack.c.l.b16 %v354
    %v436 = vunpack.c.h.b16 %v354
    %v437 = vunpack.c.l.b16 %v355
    %v438 = vunpack.c.h.b16 %v355
    %v439 = vunpack.c.l.b16 %v356
    %v440 = vunpack.c.h.b16 %v356
    %v441 = vunpack.c.l.b16 %v357
    %v442 = vunpack.c.h.b16 %v357
    %v443 = vunpack.c.l.b16 %v358
    %v444 = vunpack.c.h.b16 %v358
    %v445 = vunpack.c.l.b16 %v359
    %v446 = vunpack.c.h.b16 %v359
    %v447 = vunpack.c.l.b16 %v360
    %v448 = vunpack.c.h.b16 %v360
    %v449 = vunpack.c.l.b16 %v361
    %v450 = vunpack.c.h.b16 %v361
    %v451 = vunpack.c.l.b16 %v362
    %v452 = vunpack.c.h.b16 %v362
    %v453 = vunpack.c.l.b16 %v363
    %v454 = vunpack.c.h.b16 %v363
    %v455 = vunpack.c.l.b16 %v364
    %v456 = vunpack.c.h.b16 %v364
    %v457 = vunpack.c.l.b16 %v365
    %v458 = vunpack.c.h.b16 %v365
    %v459 = vunpack.c.l.b16 %v366
    %v460 = vunpack.c.h.b16 %v366
    %v461 = vunpack.c.l.b16 %v367
    %v462 = vunpack.c.h.b16 %v367
    %v463 = vunpack.c.l.b16 %v368
    %v464 = vunpack.c.h.b16 %v368
    %v465 = vpack.c.b16 %v405, %v401
    %v466 = vpack.c.b16 %v406, %v402
    %v467 = vpack.c.b16 %v407, %v403
    %v468 = vpack.c.b16 %v408, %v404
    %v469 = vpack.c.b16 %v413, %v409
    %v470 = vpack.c.b16 %v414, %v410
    %v471 = vpack.c.b16 %v415, %v411
    %v472 = vpack.c.b16 %v416, %v412
    %v473 = vpack.c.b16 %v421, %v417
    %v474 = vpack.c.b16 %v422, %v418
    %v475 = vpack.c.b16 %v423, %v419
    %v476 = vpack.c.b16 %v424, %v420
    %v477 = vpack.c.b16 %v429, %v425
    %v478 = vpack.c.b16 %v430, %v426
    %v479 = vpack.c.b16 %v431, %v427
    %v480 = vpack.c.b16 %v432, %v428
    %v481 = vpack.c.b16 %v437, %v433
    %v482 = vpack.c.b16 %v438, %v434
    %v483 = vpack.c.b16 %v439, %v435
    %v484 = vpack.c.b16 %v440, %v436
    %v485 = vpack.c.b16 %v445, %v441
    %v486 = vpack.c.b16 %v446, %v442
    %v487 = vpack.c.b16 %v447, %v443
    %v488 = vpack.c.b16 %v448, %v444
    %v489 = vpack.c.b16 %v453, %v449
    %v490 = vpack.c.b16 %v454, %v450
    %v491 = vpack.c.b16 %v455, %v451
    %v492 = vpack.c.b16 %v456, %v452
    %v493 = vpack.c.b16 %v461, %v457
    %v494 = vpack.c.b16 %v462, %v458
    %v495 = vpack.c.b16 %v463, %v459
    %v496 = vpack.c.b16 %v464, %v460
    %529 = vmatpush.bf16.msra.mxu0 %v493
    %530 = vmatpush.bf16.msra.mxu0 %v489
    %531 = vmatpush.bf16.msra.mxu0 %v485
    %532 = vmatpush.bf16.msra.mxu0 %v481
    %533 = vmatpush.bf16.msra.mxu0 %v477
    %534 = vmatpush.bf16.msra.mxu0 %v473
    %535 = vmatpush.bf16.msra.mxu0 %v469
    %536 = vmatpush.bf16.msra.mxu0 %v465
    %537 = vmatmul.bf16.gmra.mxu0 %v336
    %v538 = vpop.f32.mrf.mxu0
    %v539 = vadd.f32 0.0, %v538
    %v540 = vpop.f32.mrf.mxu0
    %541 = vdwg.mxu0
    %542 = vmatpush.bf16.msra.mxu0 %v494
    %543 = vmatpush.bf16.msra.mxu0 %v490
    %544 = vmatpush.bf16.msra.mxu0 %v486
    %545 = vmatpush.bf16.msra.mxu0 %v482
    %546 = vmatpush.bf16.msra.mxu0 %v478
    %547 = vmatpush.bf16.msra.mxu0 %v474
    %548 = vmatpush.bf16.msra.mxu0 %v470
    %549 = vmatpush.bf16.msra.mxu0 %v466
    %550 = vmatmul.bf16.gmra.mxu0 %v336
    %v551 = vpop.f32.mrf.mxu0
    %v552 = vadd.f32 0.0, %v551
    %v553 = vpop.f32.mrf.mxu0
    %554 = vdwg.mxu0
    %555 = vmatpush.bf16.msra.mxu0 %v495
    %556 = vmatpush.bf16.msra.mxu0 %v491
    %557 = vmatpush.bf16.msra.mxu0 %v487
    %558 = vmatpush.bf16.msra.mxu0 %v483
    %559 = vmatpush.bf16.msra.mxu0 %v479
    %560 = vmatpush.bf16.msra.mxu0 %v475
    %561 = vmatpush.bf16.msra.mxu0 %v471
    %562 = vmatpush.bf16.msra.mxu0 %v467
    %563 = vmatmul.bf16.gmra.mxu0 %v336
    %v564 = vpop.f32.mrf.mxu0
    %v565 = vadd.f32 0.0, %v564
    %v566 = vpop.f32.mrf.mxu0
    %567 = vdwg.mxu0
    %568 = vmatpush.bf16.msra.mxu0 %v496
    %569 = vmatpush.bf16.msra.mxu0 %v492
    %570 = vmatpush.bf16.msra.mxu0 %v488
    %571 = vmatpush.bf16.msra.mxu0 %v484
    %572 = vmatpush.bf16.msra.mxu0 %v480
    %573 = vmatpush.bf16.msra.mxu0 %v476
    %574 = vmatpush.bf16.msra.mxu0 %v472
    %575 = vmatpush.bf16.msra.mxu0 %v468
    %576 = vmatmul.bf16.gmra.mxu0 %v336
    %v577 = vpop.f32.mrf.mxu0
    %v578 = vadd.f32 0.0, %v577
    %v579 = vpop.f32.mrf.mxu0
    %580 = vdwg.mxu0
    %v581 = vadd.f32 %v332, %v539
    %v582 = vadd.f32 %v333, %v552
    %v583 = vadd.f32 %v334, %v565
    %v584 = vadd.f32 %v335, %v578
    %v585 = vmul.f32 %v581, 0.5
    %v586 = vmul.f32 %v582, 0.5
    %v587 = vtanh.pop %v585
    %v588 = vtanh.pop %v586
    %v589 = vadd.f32 %v587, 1.0
    %v590 = vadd.f32 %v588, 1.0
    %v591 = vmul.f32 %v589, 0.5
    %v592 = vmul.f32 %v590, 0.5
    %v593 = vtanh.pop %v583
    %v594 = vmul.f32 %v584, 0.5
    %v595 = vtanh.pop %v594
    %v596 = vadd.f32 %v595, 1.0
    %v597 = vmul.f32 %v596, 0.5
    %v598 = vmul.f32 %v592, %v325
    %v599 = vmul.f32 %v591, %v593
    %v600 = vadd.f32 %v598, %v599
    %v601 = vtanh.pop %v600
    %v602 = vmul.f32 %v597, %v601
    %s603 = scalar_lea.vmem [#allocation9], 8
    %604 = vst [vmem:[%s603] sm:$0xff] %v602
    %s605 = scalar_lea.vmem [#allocation4], 32
    %v606 = vld [vmem:[%s605] sm:$0xff]
    %v607 = vld [vmem:[%s605 + $0x8] sm:$0xff]
    %v608 = vunpack.c.l.bf16 %v606
    %v609 = vunpack.c.h.bf16 %v606
    %v610 = vunpack.c.l.bf16 %v607
    %v611 = vunpack.c.h.bf16 %v607
    %v612 = vpack.c.bf16 %v602, %v602
    %v613 = vld [vmem:[#allocation7] sm:$0xff]
    %v614 = vld [vmem:[#allocation7 + $0x8] sm:$0xff]
    %v615 = vld [vmem:[#allocation7 + $0x10] sm:$0xff]
    %v616 = vld [vmem:[#allocation7 + $0x18] sm:$0xff]
    %v617 = vld [vmem:[#allocation7 + $0x20] sm:$0xff]
    %v618 = vld [vmem:[#allocation7 + $0x28] sm:$0xff]
    %v619 = vld [vmem:[#allocation7 + $0x30] sm:$0xff]
    %v620 = vld [vmem:[#allocation7 + $0x38] sm:$0xff]
    %v621 = vld [vmem:[#allocation7 + $0x40] sm:$0xff]
    %v622 = vld [vmem:[#allocation7 + $0x48] sm:$0xff]
    %v623 = vld [vmem:[#allocation7 + $0x50] sm:$0xff]
    %v624 = vld [vmem:[#allocation7 + $0x58] sm:$0xff]
    %v625 = vld [vmem:[#allocation7 + $0x60] sm:$0xff]
    %v626 = vld [vmem:[#allocation7 + $0x68] sm:$0xff]
    %v627 = vld [vmem:[#allocation7 + $0x70] sm:$0xff]
    %v628 = vld [vmem:[#allocation7 + $0x78] sm:$0xff]
    %v629 = vld [vmem:[#allocation7 + $0x80] sm:$0xff]
    %v630 = vld [vmem:[#allocation7 + $0x88] sm:$0xff]
    %v631 = vld [vmem:[#allocation7 + $0x90] sm:$0xff]
    %v632 = vld [vmem:[#allocation7 + $0x98] sm:$0xff]
    %v633 = vld [vmem:[#allocation7 + $0xa0] sm:$0xff]
    %v634 = vld [vmem:[#allocation7 + $0xa8] sm:$0xff]
    %v635 = vld [vmem:[#allocation7 + $0xb0] sm:$0xff]
    %v636 = vld [vmem:[#allocation7 + $0xb8] sm:$0xff]
    %v637 = vld [vmem:[#allocation7 + $0xc0] sm:$0xff]
    %v638 = vld [vmem:[#allocation7 + $0xc8] sm:$0xff]
    %v639 = vld [vmem:[#allocation7 + $0xd0] sm:$0xff]
    %v640 = vld [vmem:[#allocation7 + $0xd8] sm:$0xff]
    %v641 = vld [vmem:[#allocation7 + $0xe0] sm:$0xff]
    %v642 = vld [vmem:[#allocation7 + $0xe8] sm:$0xff]
    %v643 = vld [vmem:[#allocation7 + $0xf0] sm:$0xff]
    %v644 = vld [vmem:[#allocation7 + $0xf8] sm:$0xff]
    %v677 = vunpack.c.l.b16 %v613
    %v678 = vunpack.c.h.b16 %v613
    %v679 = vunpack.c.l.b16 %v614
    %v680 = vunpack.c.h.b16 %v614
    %v681 = vunpack.c.l.b16 %v615
    %v682 = vunpack.c.h.b16 %v615
    %v683 = vunpack.c.l.b16 %v616
    %v684 = vunpack.c.h.b16 %v616
    %v685 = vunpack.c.l.b16 %v617
    %v686 = vunpack.c.h.b16 %v617
    %v687 = vunpack.c.l.b16 %v618
    %v688 = vunpack.c.h.b16 %v618
    %v689 = vunpack.c.l.b16 %v619
    %v690 = vunpack.c.h.b16 %v619
    %v691 = vunpack.c.l.b16 %v620
    %v692 = vunpack.c.h.b16 %v620
    %v693 = vunpack.c.l.b16 %v621
    %v694 = vunpack.c.h.b16 %v621
    %v695 = vunpack.c.l.b16 %v622
    %v696 = vunpack.c.h.b16 %v622
    %v697 = vunpack.c.l.b16 %v623
    %v698 = vunpack.c.h.b16 %v623
    %v699 = vunpack.c.l.b16 %v624
    %v700 = vunpack.c.h.b16 %v624
    %v701 = vunpack.c.l.b16 %v625
    %v702 = vunpack.c.h.b16 %v625
    %v703 = vunpack.c.l.b16 %v626
    %v704 = vunpack.c.h.b16 %v626
    %v705 = vunpack.c.l.b16 %v627
    %v706 = vunpack.c.h.b16 %v627
    %v707 = vunpack.c.l.b16 %v628
    %v708 = vunpack.c.h.b16 %v628
    %v709 = vunpack.c.l.b16 %v629
    %v710 = vunpack.c.h.b16 %v629
    %v711 = vunpack.c.l.b16 %v630
    %v712 = vunpack.c.h.b16 %v630
    %v713 = vunpack.c.l.b16 %v631
    %v714 = vunpack.c.h.b16 %v631
    %v715 = vunpack.c.l.b16 %v632
    %v716 = vunpack.c.h.b16 %v632
    %v717 = vunpack.c.l.b16 %v633
    %v718 = vunpack.c.h.b16 %v633
    %v719 = vunpack.c.l.b16 %v634
    %v720 = vunpack.c.h.b16 %v634
    %v721 = vunpack.c.l.b16 %v635
    %v722 = vunpack.c.h.b16 %v635
    %v723 = vunpack.c.l.b16 %v636
    %v724 = vunpack.c.h.b16 %v636
    %v725 = vunpack.c.l.b16 %v637
    %v726 = vunpack.c.h.b16 %v637
    %v727 = vunpack.c.l.b16 %v638
    %v728 = vunpack.c.h.b16 %v638
    %v729 = vunpack.c.l.b16 %v639
    %v730 = vunpack.c.h.b16 %v639
    %v731 = vunpack.c.l.b16 %v640
    %v732 = vunpack.c.h.b16 %v640
    %v733 = vunpack.c.l.b16 %v641
    %v734 = vunpack.c.h.b16 %v641
    %v735 = vunpack.c.l.b16 %v642
    %v736 = vunpack.c.h.b16 %v642
    %v737 = vunpack.c.l.b16 %v643
    %v738 = vunpack.c.h.b16 %v643
    %v739 = vunpack.c.l.b16 %v644
    %v740 = vunpack.c.h.b16 %v644
    %v741 = vpack.c.b16 %v681, %v677
    %v742 = vpack.c.b16 %v682, %v678
    %v743 = vpack.c.b16 %v683, %v679
    %v744 = vpack.c.b16 %v684, %v680
    %v745 = vpack.c.b16 %v689, %v685
    %v746 = vpack.c.b16 %v690, %v686
    %v747 = vpack.c.b16 %v691, %v687
    %v748 = vpack.c.b16 %v692, %v688
    %v749 = vpack.c.b16 %v697, %v693
    %v750 = vpack.c.b16 %v698, %v694
    %v751 = vpack.c.b16 %v699, %v695
    %v752 = vpack.c.b16 %v700, %v696
    %v753 = vpack.c.b16 %v705, %v701
    %v754 = vpack.c.b16 %v706, %v702
    %v755 = vpack.c.b16 %v707, %v703
    %v756 = vpack.c.b16 %v708, %v704
    %v757 = vpack.c.b16 %v713, %v709
    %v758 = vpack.c.b16 %v714, %v710
    %v759 = vpack.c.b16 %v715, %v711
    %v760 = vpack.c.b16 %v716, %v712
    %v761 = vpack.c.b16 %v721, %v717
    %v762 = vpack.c.b16 %v722, %v718
    %v763 = vpack.c.b16 %v723, %v719
    %v764 = vpack.c.b16 %v724, %v720
    %v765 = vpack.c.b16 %v729, %v725
    %v766 = vpack.c.b16 %v730, %v726
    %v767 = vpack.c.b16 %v731, %v727
    %v768 = vpack.c.b16 %v732, %v728
    %v769 = vpack.c.b16 %v737, %v733
    %v770 = vpack.c.b16 %v738, %v734
    %v771 = vpack.c.b16 %v739, %v735
    %v772 = vpack.c.b16 %v740, %v736
    %805 = vmatpush.bf16.msra.mxu0 %v769
    %806 = vmatpush.bf16.msra.mxu0 %v765
    %807 = vmatpush.bf16.msra.mxu0 %v761
    %808 = vmatpush.bf16.msra.mxu0 %v757
    %809 = vmatpush.bf16.msra.mxu0 %v753
    %810 = vmatpush.bf16.msra.mxu0 %v749
    %811 = vmatpush.bf16.msra.mxu0 %v745
    %812 = vmatpush.bf16.msra.mxu0 %v741
    %813 = vmatmul.bf16.gmra.mxu0 %v612
    %v814 = vpop.f32.mrf.mxu0
    %v815 = vadd.f32 0.0, %v814
    %v816 = vpop.f32.mrf.mxu0
    %817 = vdwg.mxu0
    %818 = vmatpush.bf16.msra.mxu0 %v770
    %819 = vmatpush.bf16.msra.mxu0 %v766
    %820 = vmatpush.bf16.msra.mxu0 %v762
    %821 = vmatpush.bf16.msra.mxu0 %v758
    %822 = vmatpush.bf16.msra.mxu0 %v754
    %823 = vmatpush.bf16.msra.mxu0 %v750
    %824 = vmatpush.bf16.msra.mxu0 %v746
    %825 = vmatpush.bf16.msra.mxu0 %v742
    %826 = vmatmul.bf16.gmra.mxu0 %v612
    %v827 = vpop.f32.mrf.mxu0
    %v828 = vadd.f32 0.0, %v827
    %v829 = vpop.f32.mrf.mxu0
    %830 = vdwg.mxu0
    %831 = vmatpush.bf16.msra.mxu0 %v771
    %832 = vmatpush.bf16.msra.mxu0 %v767
    %833 = vmatpush.bf16.msra.mxu0 %v763
    %834 = vmatpush.bf16.msra.mxu0 %v759
    %835 = vmatpush.bf16.msra.mxu0 %v755
    %836 = vmatpush.bf16.msra.mxu0 %v751
    %837 = vmatpush.bf16.msra.mxu0 %v747
    %838 = vmatpush.bf16.msra.mxu0 %v743
    %839 = vmatmul.bf16.gmra.mxu0 %v612
    %v840 = vpop.f32.mrf.mxu0
    %v841 = vadd.f32 0.0, %v840
    %v842 = vpop.f32.mrf.mxu0
    %843 = vdwg.mxu0
    %844 = vmatpush.bf16.msra.mxu0 %v772
    %845 = vmatpush.bf16.msra.mxu0 %v768
    %846 = vmatpush.bf16.msra.mxu0 %v764
    %847 = vmatpush.bf16.msra.mxu0 %v760
    %848 = vmatpush.bf16.msra.mxu0 %v756
    %849 = vmatpush.bf16.msra.mxu0 %v752
    %850 = vmatpush.bf16.msra.mxu0 %v748
    %851 = vmatpush.bf16.msra.mxu0 %v744
    %852 = vmatmul.bf16.gmra.mxu0 %v612
    %v853 = vpop.f32.mrf.mxu0
    %v854 = vadd.f32 0.0, %v853
    %v855 = vpop.f32.mrf.mxu0
    %856 = vdwg.mxu0
    %v857 = vadd.f32 %v608, %v815
    %v858 = vadd.f32 %v609, %v828
    %v859 = vadd.f32 %v610, %v841
    %v860 = vadd.f32 %v611, %v854
    %v861 = vmul.f32 %v857, 0.5
    %v862 = vmul.f32 %v858, 0.5
    %v863 = vtanh.pop %v861
    %v864 = vtanh.pop %v862
    %v865 = vadd.f32 %v863, 1.0
    %v866 = vadd.f32 %v864, 1.0
    %v867 = vmul.f32 %v865, 0.5
    %v868 = vmul.f32 %v866, 0.5
    %v869 = vtanh.pop %v859
    %v870 = vmul.f32 %v860, 0.5
    %v871 = vtanh.pop %v870
    %v872 = vadd.f32 %v871, 1.0
    %v873 = vmul.f32 %v872, 0.5
    %v874 = vmul.f32 %v868, %v600
    %v875 = vmul.f32 %v867, %v869
    %v876 = vadd.f32 %v874, %v875
    %v877 = vtanh.pop %v876
    %v878 = vmul.f32 %v873, %v877
    %s879 = scalar_lea.vmem [#allocation9], 16
    %880 = vst [vmem:[%s879] sm:$0xff] %v878
    %s881 = scalar_lea.vmem [#allocation4], 48
    %v882 = vld [vmem:[%s881] sm:$0xff]
    %v883 = vld [vmem:[%s881 + $0x8] sm:$0xff]
    %v884 = vunpack.c.l.bf16 %v882
    %v885 = vunpack.c.h.bf16 %v882
    %v886 = vunpack.c.l.bf16 %v883
    %v887 = vunpack.c.h.bf16 %v883
    %v888 = vpack.c.bf16 %v878, %v878
    %v889 = vld [vmem:[#allocation7] sm:$0xff]
    %v890 = vld [vmem:[#allocation7 + $0x8] sm:$0xff]
    %v891 = vld [vmem:[#allocation7 + $0x10] sm:$0xff]
    %v892 = vld [vmem:[#allocation7 + $0x18] sm:$0xff]
    %v893 = vld [vmem:[#allocation7 + $0x20] sm:$0xff]
    %v894 = vld [vmem:[#allocation7 + $0x28] sm:$0xff]
    %v895 = vld [vmem:[#allocation7 + $0x30] sm:$0xff]
    %v896 = vld [vmem:[#allocation7 + $0x38] sm:$0xff]
    %v897 = vld [vmem:[#allocation7 + $0x40] sm:$0xff]
    %v898 = vld [vmem:[#allocation7 + $0x48] sm:$0xff]
    %v899 = vld [vmem:[#allocation7 + $0x50] sm:$0xff]
    %v900 = vld [vmem:[#allocation7 + $0x58] sm:$0xff]
    %v901 = vld [vmem:[#allocation7 + $0x60] sm:$0xff]
    %v902 = vld [vmem:[#allocation7 + $0x68] sm:$0xff]
    %v903 = vld [vmem:[#allocation7 + $0x70] sm:$0xff]
    %v904 = vld [vmem:[#allocation7 + $0x78] sm:$0xff]
    %v905 = vld [vmem:[#allocation7 + $0x80] sm:$0xff]
    %v906 = vld [vmem:[#allocation7 + $0x88] sm:$0xff]
    %v907 = vld [vmem:[#allocation7 + $0x90] sm:$0xff]
    %v908 = vld [vmem:[#allocation7 + $0x98] sm:$0xff]
    %v909 = vld [vmem:[#allocation7 + $0xa0] sm:$0xff]
    %v910 = vld [vmem:[#allocation7 + $0xa8] sm:$0xff]
    %v911 = vld [vmem:[#allocation7 + $0xb0] sm:$0xff]
    %v912 = vld [vmem:[#allocation7 + $0xb8] sm:$0xff]
    %v913 = vld [vmem:[#allocation7 + $0xc0] sm:$0xff]
    %v914 = vld [vmem:[#allocation7 + $0xc8] sm:$0xff]
    %v915 = vld [vmem:[#allocation7 + $0xd0] sm:$0xff]
    %v916 = vld [vmem:[#allocation7 + $0xd8] sm:$0xff]
    %v917 = vld [vmem:[#allocation7 + $0xe0] sm:$0xff]
    %v918 = vld [vmem:[#allocation7 + $0xe8] sm:$0xff]
    %v919 = vld [vmem:[#allocation7 + $0xf0] sm:$0xff]
    %v920 = vld [vmem:[#allocation7 + $0xf8] sm:$0xff]
    %v953 = vunpack.c.l.b16 %v889
    %v954 = vunpack.c.h.b16 %v889
    %v955 = vunpack.c.l.b16 %v890
    %v956 = vunpack.c.h.b16 %v890
    %v957 = vunpack.c.l.b16 %v891
    %v958 = vunpack.c.h.b16 %v891
    %v959 = vunpack.c.l.b16 %v892
    %v960 = vunpack.c.h.b16 %v892
    %v961 = vunpack.c.l.b16 %v893
    %v962 = vunpack.c.h.b16 %v893
    %v963 = vunpack.c.l.b16 %v894
    %v964 = vunpack.c.h.b16 %v894
    %v965 = vunpack.c.l.b16 %v895
    %v966 = vunpack.c.h.b16 %v895
    %v967 = vunpack.c.l.b16 %v896
    %v968 = vunpack.c.h.b16 %v896
    %v969 = vunpack.c.l.b16 %v897
    %v970 = vunpack.c.h.b16 %v897
    %v971 = vunpack.c.l.b16 %v898
    %v972 = vunpack.c.h.b16 %v898
    %v973 = vunpack.c.l.b16 %v899
    %v974 = vunpack.c.h.b16 %v899
    %v975 = vunpack.c.l.b16 %v900
    %v976 = vunpack.c.h.b16 %v900
    %v977 = vunpack.c.l.b16 %v901
    %v978 = vunpack.c.h.b16 %v901
    %v979 = vunpack.c.l.b16 %v902
    %v980 = vunpack.c.h.b16 %v902
    %v981 = vunpack.c.l.b16 %v903
    %v982 = vunpack.c.h.b16 %v903
    %v983 = vunpack.c.l.b16 %v904
    %v984 = vunpack.c.h.b16 %v904
    %v985 = vunpack.c.l.b16 %v905
    %v986 = vunpack.c.h.b16 %v905
    %v987 = vunpack.c.l.b16 %v906
    %v988 = vunpack.c.h.b16 %v906
    %v989 = vunpack.c.l.b16 %v907
    %v990 = vunpack.c.h.b16 %v907
    %v991 = vunpack.c.l.b16 %v908
    %v992 = vunpack.c.h.b16 %v908
    %v993 = vunpack.c.l.b16 %v909
    %v994 = vunpack.c.h.b16 %v909
    %v995 = vunpack.c.l.b16 %v910
    %v996 = vunpack.c.h.b16 %v910
    %v997 = vunpack.c.l.b16 %v911
    %v998 = vunpack.c.h.b16 %v911
    %v999 = vunpack.c.l.b16 %v912
    %v1000 = vunpack.c.h.b16 %v912
    %v1001 = vunpack.c.l.b16 %v913
    %v1002 = vunpack.c.h.b16 %v913
    %v1003 = vunpack.c.l.b16 %v914
    %v1004 = vunpack.c.h.b16 %v914
    %v1005 = vunpack.c.l.b16 %v915
    %v1006 = vunpack.c.h.b16 %v915
    %v1007 = vunpack.c.l.b16 %v916
    %v1008 = vunpack.c.h.b16 %v916
    %v1009 = vunpack.c.l.b16 %v917
    %v1010 = vunpack.c.h.b16 %v917
    %v1011 = vunpack.c.l.b16 %v918
    %v1012 = vunpack.c.h.b16 %v918
    %v1013 = vunpack.c.l.b16 %v919
    %v1014 = vunpack.c.h.b16 %v919
    %v1015 = vunpack.c.l.b16 %v920
    %v1016 = vunpack.c.h.b16 %v920
    %v1017 = vpack.c.b16 %v957, %v953
    %v1018 = vpack.c.b16 %v958, %v954
    %v1019 = vpack.c.b16 %v959, %v955
    %v1020 = vpack.c.b16 %v960, %v956
    %v1021 = vpack.c.b16 %v965, %v961
    %v1022 = vpack.c.b16 %v966, %v962
    %v1023 = vpack.c.b16 %v967, %v963
    %v1024 = vpack.c.b16 %v968, %v964
    %v1025 = vpack.c.b16 %v973, %v969
    %v1026 = vpack.c.b16 %v974, %v970
    %v1027 = vpack.c.b16 %v975, %v971
    %v1028 = vpack.c.b16 %v976, %v972
    %v1029 = vpack.c.b16 %v981, %v977
    %v1030 = vpack.c.b16 %v982, %v978
    %v1031 = vpack.c.b16 %v983, %v979
    %v1032 = vpack.c.b16 %v984, %v980
    %v1033 = vpack.c.b16 %v989, %v985
    %v1034 = vpack.c.b16 %v990, %v986
    %v1035 = vpack.c.b16 %v991, %v987
    %v1036 = vpack.c.b16 %v992, %v988
    %v1037 = vpack.c.b16 %v997, %v993
    %v1038 = vpack.c.b16 %v998, %v994
    %v1039 = vpack.c.b16 %v999, %v995
    %v1040 = vpack.c.b16 %v1000, %v996
    %v1041 = vpack.c.b16 %v1005, %v1001
    %v1042 = vpack.c.b16 %v1006, %v1002
    %v1043 = vpack.c.b16 %v1007, %v1003
    %v1044 = vpack.c.b16 %v1008, %v1004
    %v1045 = vpack.c.b16 %v1013, %v1009
    %v1046 = vpack.c.b16 %v1014, %v1010
    %v1047 = vpack.c.b16 %v1015, %v1011
    %v1048 = vpack.c.b16 %v1016, %v1012
    %1081 = vmatpush.bf16.msra.mxu0 %v1045
    %1082 = vmatpush.bf16.msra.mxu0 %v1041
    %1083 = vmatpush.bf16.msra.mxu0 %v1037
    %1084 = vmatpush.bf16.msra.mxu0 %v1033
    %1085 = vmatpush.bf16.msra.mxu0 %v1029
    %1086 = vmatpush.bf16.msra.mxu0 %v1025
    %1087 = vmatpush.bf16.msra.mxu0 %v1021
    %1088 = vmatpush.bf16.msra.mxu0 %v1017
    %1089 = vmatmul.bf16.gmra.mxu0 %v888
    %v1090 = vpop.f32.mrf.mxu0
    %v1091 = vadd.f32 0.0, %v1090
    %v1092 = vpop.f32.mrf.mxu0
    %1093 = vdwg.mxu0
    %1094 = vmatpush.bf16.msra.mxu0 %v1046
    %1095 = vmatpush.bf16.msra.mxu0 %v1042
    %1096 = vmatpush.bf16.msra.mxu0 %v1038
    %1097 = vmatpush.bf16.msra.mxu0 %v1034
    %1098 = vmatpush.bf16.msra.mxu0 %v1030
    %1099 = vmatpush.bf16.msra.mxu0 %v1026
    %1100 = vmatpush.bf16.msra.mxu0 %v1022
    %1101 = vmatpush.bf16.msra.mxu0 %v1018
    %1102 = vmatmul.bf16.gmra.mxu0 %v888
    %v1103 = vpop.f32.mrf.mxu0
    %v1104 = vadd.f32 0.0, %v1103
    %v1105 = vpop.f32.mrf.mxu0
    %1106 = vdwg.mxu0
    %1107 = vmatpush.bf16.msra.mxu0 %v1047
    %1108 = vmatpush.bf16.msra.mxu0 %v1043
    %1109 = vmatpush.bf16.msra.mxu0 %v1039
    %1110 = vmatpush.bf16.msra.mxu0 %v1035
    %1111 = vmatpush.bf16.msra.mxu0 %v1031
    %1112 = vmatpush.bf16.msra.mxu0 %v1027
    %1113 = vmatpush.bf16.msra.mxu0 %v1023
    %1114 = vmatpush.bf16.msra.mxu0 %v1019
    %1115 = vmatmul.bf16.gmra.mxu0 %v888
    %v1116 = vpop.f32.mrf.mxu0
    %v1117 = vadd.f32 0.0, %v1116
    %v1118 = vpop.f32.mrf.mxu0
    %1119 = vdwg.mxu0
    %1120 = vmatpush.bf16.msra.mxu0 %v1048
    %1121 = vmatpush.bf16.msra.mxu0 %v1044
    %1122 = vmatpush.bf16.msra.mxu0 %v1040
    %1123 = vmatpush.bf16.msra.mxu0 %v1036
    %1124 = vmatpush.bf16.msra.mxu0 %v1032
    %1125 = vmatpush.bf16.msra.mxu0 %v1028
    %1126 = vmatpush.bf16.msra.mxu0 %v1024
    %1127 = vmatpush.bf16.msra.mxu0 %v1020
    %1128 = vmatmul.bf16.gmra.mxu0 %v888
    %v1129 = vpop.f32.mrf.mxu0
    %v1130 = vadd.f32 0.0, %v1129
    %v1131 = vpop.f32.mrf.mxu0
    %1132 = vdwg.mxu0
    %v1133 = vadd.f32 %v884, %v1091
    %v1134 = vadd.f32 %v885, %v1104
    %v1135 = vadd.f32 %v886, %v1117
    %v1136 = vadd.f32 %v887, %v1130
    %v1137 = vmul.f32 %v1133, 0.5
    %v1138 = vmul.f32 %v1134, 0.5
    %v1139 = vtanh.pop %v1137
    %v1140 = vtanh.pop %v1138
    %v1141 = vadd.f32 %v1139, 1.0
    %v1142 = vadd.f32 %v1140, 1.0
    %v1143 = vmul.f32 %v1141, 0.5
    %v1144 = vmul.f32 %v1142, 0.5
    %v1145 = vtanh.pop %v1135
    %v1146 = vmul.f32 %v1136, 0.5
    %v1147 = vtanh.pop %v1146
    %v1148 = vadd.f32 %v1147, 1.0
    %v1149 = vmul.f32 %v1148, 0.5
    %v1150 = vmul.f32 %v1144, %v876
    %v1151 = vmul.f32 %v1143, %v1145
    %v1152 = vadd.f32 %v1150, %v1151
    %v1153 = vtanh.pop %v1152
    %v1154 = vmul.f32 %v1149, %v1153
    %s1155 = scalar_lea.vmem [#allocation9], 24
    %1156 = vst [vmem:[%s1155] sm:$0xff] %v1154
    %s1157 = scalar_lea.vmem [#allocation4], 64
    %v1158 = vld [vmem:[%s1157] sm:$0xff]
    %v1159 = vld [vmem:[%s1157 + $0x8] sm:$0xff]
    %v1160 = vunpack.c.l.bf16 %v1158
    %v1161 = vunpack.c.h.bf16 %v1158
    %v1162 = vunpack.c.l.bf16 %v1159
    %v1163 = vunpack.c.h.bf16 %v1159
    %v1164 = vpack.c.bf16 %v1154, %v1154
    %v1165 = vld [vmem:[#allocation7] sm:$0xff]
    %v1166 = vld [vmem:[#allocation7 + $0x8] sm:$0xff]
    %v1167 = vld [vmem:[#allocation7 + $0x10] sm:$0xff]
    %v1168 = vld [vmem:[#allocation7 + $0x18] sm:$0xff]
    %v1169 = vld [vmem:[#allocation7 + $0x20] sm:$0xff]
    %v1170 = vld [vmem:[#allocation7 + $0x28] sm:$0xff]
    %v1171 = vld [vmem:[#allocation7 + $0x30] sm:$0xff]
    %v1172 = vld [vmem:[#allocation7 + $0x38] sm:$0xff]
    %v1173 = vld [vmem:[#allocation7 + $0x40] sm:$0xff]
    %v1174 = vld [vmem:[#allocation7 + $0x48] sm:$0xff]
    %v1175 = vld [vmem:[#allocation7 + $0x50] sm:$0xff]
    %v1176 = vld [vmem:[#allocation7 + $0x58] sm:$0xff]
    %v1177 = vld [vmem:[#allocation7 + $0x60] sm:$0xff]
    %v1178 = vld [vmem:[#allocation7 + $0x68] sm:$0xff]
    %v1179 = vld [vmem:[#allocation7 + $0x70] sm:$0xff]
    %v1180 = vld [vmem:[#allocation7 + $0x78] sm:$0xff]
    %v1181 = vld [vmem:[#allocation7 + $0x80] sm:$0xff]
    %v1182 = vld [vmem:[#allocation7 + $0x88] sm:$0xff]
    %v1183 = vld [vmem:[#allocation7 + $0x90] sm:$0xff]
    %v1184 = vld [vmem:[#allocation7 + $0x98] sm:$0xff]
    %v1185 = vld [vmem:[#allocation7 + $0xa0] sm:$0xff]
    %v1186 = vld [vmem:[#allocation7 + $0xa8] sm:$0xff]
    %v1187 = vld [vmem:[#allocation7 + $0xb0] sm:$0xff]
    %v1188 = vld [vmem:[#allocation7 + $0xb8] sm:$0xff]
    %v1189 = vld [vmem:[#allocation7 + $0xc0] sm:$0xff]
    %v1190 = vld [vmem:[#allocation7 + $0xc8] sm:$0xff]
    %v1191 = vld [vmem:[#allocation7 + $0xd0] sm:$0xff]
    %v1192 = vld [vmem:[#allocation7 + $0xd8] sm:$0xff]
    %v1193 = vld [vmem:[#allocation7 + $0xe0] sm:$0xff]
    %v1194 = vld [vmem:[#allocation7 + $0xe8] sm:$0xff]
    %v1195 = vld [vmem:[#allocation7 + $0xf0] sm:$0xff]
    %v1196 = vld [vmem:[#allocation7 + $0xf8] sm:$0xff]
    %v1229 = vunpack.c.l.b16 %v1165
    %v1230 = vunpack.c.h.b16 %v1165
    %v1231 = vunpack.c.l.b16 %v1166
    %v1232 = vunpack.c.h.b16 %v1166
    %v1233 = vunpack.c.l.b16 %v1167
    %v1234 = vunpack.c.h.b16 %v1167
    %v1235 = vunpack.c.l.b16 %v1168
    %v1236 = vunpack.c.h.b16 %v1168
    %v1237 = vunpack.c.l.b16 %v1169
    %v1238 = vunpack.c.h.b16 %v1169
    %v1239 = vunpack.c.l.b16 %v1170
    %v1240 = vunpack.c.h.b16 %v1170
    %v1241 = vunpack.c.l.b16 %v1171
    %v1242 = vunpack.c.h.b16 %v1171
    %v1243 = vunpack.c.l.b16 %v1172
    %v1244 = vunpack.c.h.b16 %v1172
    %v1245 = vunpack.c.l.b16 %v1173
    %v1246 = vunpack.c.h.b16 %v1173
    %v1247 = vunpack.c.l.b16 %v1174
    %v1248 = vunpack.c.h.b16 %v1174
    %v1249 = vunpack.c.l.b16 %v1175
    %v1250 = vunpack.c.h.b16 %v1175
    %v1251 = vunpack.c.l.b16 %v1176
    %v1252 = vunpack.c.h.b16 %v1176
    %v1253 = vunpack.c.l.b16 %v1177
    %v1254 = vunpack.c.h.b16 %v1177
    %v1255 = vunpack.c.l.b16 %v1178
    %v1256 = vunpack.c.h.b16 %v1178
    %v1257 = vunpack.c.l.b16 %v1179
    %v1258 = vunpack.c.h.b16 %v1179
    %v1259 = vunpack.c.l.b16 %v1180
    %v1260 = vunpack.c.h.b16 %v1180
    %v1261 = vunpack.c.l.b16 %v1181
    %v1262 = vunpack.c.h.b16 %v1181
    %v1263 = vunpack.c.l.b16 %v1182
    %v1264 = vunpack.c.h.b16 %v1182
    %v1265 = vunpack.c.l.b16 %v1183
    %v1266 = vunpack.c.h.b16 %v1183
    %v1267 = vunpack.c.l.b16 %v1184
    %v1268 = vunpack.c.h.b16 %v1184
    %v1269 = vunpack.c.l.b16 %v1185
    %v1270 = vunpack.c.h.b16 %v1185
    %v1271 = vunpack.c.l.b16 %v1186
    %v1272 = vunpack.c.h.b16 %v1186
    %v1273 = vunpack.c.l.b16 %v1187
    %v1274 = vunpack.c.h.b16 %v1187
    %v1275 = vunpack.c.l.b16 %v1188
    %v1276 = vunpack.c.h.b16 %v1188
    %v1277 = vunpack.c.l.b16 %v1189
    %v1278 = vunpack.c.h.b16 %v1189
    %v1279 = vunpack.c.l.b16 %v1190
    %v1280 = vunpack.c.h.b16 %v1190
    %v1281 = vunpack.c.l.b16 %v1191
    %v1282 = vunpack.c.h.b16 %v1191
    %v1283 = vunpack.c.l.b16 %v1192
    %v1284 = vunpack.c.h.b16 %v1192
    %v1285 = vunpack.c.l.b16 %v1193
    %v1286 = vunpack.c.h.b16 %v1193
    %v1287 = vunpack.c.l.b16 %v1194
    %v1288 = vunpack.c.h.b16 %v1194
    %v1289 = vunpack.c.l.b16 %v1195
    %v1290 = vunpack.c.h.b16 %v1195
    %v1291 = vunpack.c.l.b16 %v1196
    %v1292 = vunpack.c.h.b16 %v1196
    %v1293 = vpack.c.b16 %v1233, %v1229
    %v1294 = vpack.c.b16 %v1234, %v1230
    %v1295 = vpack.c.b16 %v1235, %v1231
    %v1296 = vpack.c.b16 %v1236, %v1232
    %v1297 = vpack.c.b16 %v1241, %v1237
    %v1298 = vpack.c.b16 %v1242, %v1238
    %v1299 = vpack.c.b16 %v1243, %v1239
    %v1300 = vpack.c.b16 %v1244, %v1240
    %v1301 = vpack.c.b16 %v1249, %v1245
    %v1302 = vpack.c.b16 %v1250, %v1246
    %v1303 = vpack.c.b16 %v1251, %v1247
    %v1304 = vpack.c.b16 %v1252, %v1248
    %v1305 = vpack.c.b16 %v1257, %v1253
    %v1306 = vpack.c.b16 %v1258, %v1254
    %v1307 = vpack.c.b16 %v1259, %v1255
    %v1308 = vpack.c.b16 %v1260, %v1256
    %v1309 = vpack.c.b16 %v1265, %v1261
    %v1310 = vpack.c.b16 %v1266, %v1262
    %v1311 = vpack.c.b16 %v1267, %v1263
    %v1312 = vpack.c.b16 %v1268, %v1264
    %v1313 = vpack.c.b16 %v1273, %v1269
    %v1314 = vpack.c.b16 %v1274, %v1270
    %v1315 = vpack.c.b16 %v1275, %v1271
    %v1316 = vpack.c.b16 %v1276, %v1272
    %v1317 = vpack.c.b16 %v1281, %v1277
    %v1318 = vpack.c.b16 %v1282, %v1278
    %v1319 = vpack.c.b16 %v1283, %v1279
    %v1320 = vpack.c.b16 %v1284, %v1280
    %v1321 = vpack.c.b16 %v1289, %v1285
    %v1322 = vpack.c.b16 %v1290, %v1286
    %v1323 = vpack.c.b16 %v1291, %v1287
    %v1324 = vpack.c.b16 %v1292, %v1288
    %1357 = vmatpush.bf16.msra.mxu0 %v1321
    %1358 = vmatpush.bf16.msra.mxu0 %v1317
    %1359 = vmatpush.bf16.msra.mxu0 %v1313
    %1360 = vmatpush.bf16.msra.mxu0 %v1309
    %1361 = vmatpush.bf16.msra.mxu0 %v1305
    %1362 = vmatpush.bf16.msra.mxu0 %v1301
    %1363 = vmatpush.bf16.msra.mxu0 %v1297
    %1364 = vmatpush.bf16.msra.mxu0 %v1293
    %1365 = vmatmul.bf16.gmra.mxu0 %v1164
    %v1366 = vpop.f32.mrf.mxu0
    %v1367 = vadd.f32 0.0, %v1366
    %v1368 = vpop.f32.mrf.mxu0
    %1369 = vdwg.mxu0
    %1370 = vmatpush.bf16.msra.mxu0 %v1322
    %1371 = vmatpush.bf16.msra.mxu0 %v1318
    %1372 = vmatpush.bf16.msra.mxu0 %v1314
    %1373 = vmatpush.bf16.msra.mxu0 %v1310
    %1374 = vmatpush.bf16.msra.mxu0 %v1306
    %1375 = vmatpush.bf16.msra.mxu0 %v1302
    %1376 = vmatpush.bf16.msra.mxu0 %v1298
    %1377 = vmatpush.bf16.msra.mxu0 %v1294
    %1378 = vmatmul.bf16.gmra.mxu0 %v1164
    %v1379 = vpop.f32.mrf.mxu0
    %v1380 = vadd.f32 0.0, %v1379
    %v1381 = vpop.f32.mrf.mxu0
    %1382 = vdwg.mxu0
    %1383 = vmatpush.bf16.msra.mxu0 %v1323
    %1384 = vmatpush.bf16.msra.mxu0 %v1319
    %1385 = vmatpush.bf16.msra.mxu0 %v1315
    %1386 = vmatpush.bf16.msra.mxu0 %v1311
    %1387 = vmatpush.bf16.msra.mxu0 %v1307
    %1388 = vmatpush.bf16.msra.mxu0 %v1303
    %1389 = vmatpush.bf16.msra.mxu0 %v1299
    %1390 = vmatpush.bf16.msra.mxu0 %v1295
    %1391 = vmatmul.bf16.gmra.mxu0 %v1164
    %v1392 = vpop.f32.mrf.mxu0
    %v1393 = vadd.f32 0.0, %v1392
    %v1394 = vpop.f32.mrf.mxu0
    %1395 = vdwg.mxu0
    %1396 = vmatpush.bf16.msra.mxu0 %v1324
    %1397 = vmatpush.bf16.msra.mxu0 %v1320
    %1398 = vmatpush.bf16.msra.mxu0 %v1316
    %1399 = vmatpush.bf16.msra.mxu0 %v1312
    %1400 = vmatpush.bf16.msra.mxu0 %v1308
    %1401 = vmatpush.bf16.msra.mxu0 %v1304
    %1402 = vmatpush.bf16.msra.mxu0 %v1300
    %1403 = vmatpush.bf16.msra.mxu0 %v1296
    %1404 = vmatmul.bf16.gmra.mxu0 %v1164
    %v1405 = vpop.f32.mrf.mxu0
    %v1406 = vadd.f32 0.0, %v1405
    %v1407 = vpop.f32.mrf.mxu0
    %1408 = vdwg.mxu0
    %v1409 = vadd.f32 %v1160, %v1367
    %v1410 = vadd.f32 %v1161, %v1380
    %v1411 = vadd.f32 %v1162, %v1393
    %v1412 = vadd.f32 %v1163, %v1406
    %v1413 = vmul.f32 %v1409, 0.5
    %v1414 = vmul.f32 %v1410, 0.5
    %v1415 = vtanh.pop %v1413
    %v1416 = vtanh.pop %v1414
    %v1417 = vadd.f32 %v1415, 1.0
    %v1418 = vadd.f32 %v1416, 1.0
    %v1419 = vmul.f32 %v1417, 0.5
    %v1420 = vmul.f32 %v1418, 0.5
    %v1421 = vtanh.pop %v1411
    %v1422 = vmul.f32 %v1412, 0.5
    %v1423 = vtanh.pop %v1422
    %v1424 = vadd.f32 %v1423, 1.0
    %v1425 = vmul.f32 %v1424, 0.5
    %v1426 = vmul.f32 %v1420, %v1152
    %v1427 = vmul.f32 %v1419, %v1421
    %v1428 = vadd.f32 %v1426, %v1427
    %v1429 = vtanh.pop %v1428
    %v1430 = vmul.f32 %v1425, %v1429
    %s1431 = scalar_lea.vmem [#allocation9], 32
    %1432 = vst [vmem:[%s1431] sm:$0xff] %v1430
    %s1433 = scalar_lea.vmem [#allocation4], 80
    %v1434 = vld [vmem:[%s1433] sm:$0xff]
    %v1435 = vld [vmem:[%s1433 + $0x8] sm:$0xff]
    %v1436 = vunpack.c.l.bf16 %v1434
    %v1437 = vunpack.c.h.bf16 %v1434
    %v1438 = vunpack.c.l.bf16 %v1435
    %v1439 = vunpack.c.h.bf16 %v1435
    %v1440 = vpack.c.bf16 %v1430, %v1430
    %v1441 = vld [vmem:[#allocation7] sm:$0xff]
    %v1442 = vld [vmem:[#allocation7 + $0x8] sm:$0xff]
    %v1443 = vld [vmem:[#allocation7 + $0x10] sm:$0xff]
    %v1444 = vld [vmem:[#allocation7 + $0x18] sm:$0xff]
    %v1445 = vld [vmem:[#allocation7 + $0x20] sm:$0xff]
    %v1446 = vld [vmem:[#allocation7 + $0x28] sm:$0xff]
    %v1447 = vld [vmem:[#allocation7 + $0x30] sm:$0xff]
    %v1448 = vld [vmem:[#allocation7 + $0x38] sm:$0xff]
    %v1449 = vld [vmem:[#allocation7 + $0x40] sm:$0xff]
    %v1450 = vld [vmem:[#allocation7 + $0x48] sm:$0xff]
    %v1451 = vld [vmem:[#allocation7 + $0x50] sm:$0xff]
    %v1452 = vld [vmem:[#allocation7 + $0x58] sm:$0xff]
    %v1453 = vld [vmem:[#allocation7 + $0x60] sm:$0xff]
    %v1454 = vld [vmem:[#allocation7 + $0x68] sm:$0xff]
    %v1455 = vld [vmem:[#allocation7 + $0x70] sm:$0xff]
    %v1456 = vld [vmem:[#allocation7 + $0x78] sm:$0xff]
    %v1457 = vld [vmem:[#allocation7 + $0x80] sm:$0xff]
    %v1458 = vld [vmem:[#allocation7 + $0x88] sm:$0xff]
    %v1459 = vld [vmem:[#allocation7 + $0x90] sm:$0xff]
    %v1460 = vld [vmem:[#allocation7 + $0x98] sm:$0xff]
    %v1461 = vld [vmem:[#allocation7 + $0xa0] sm:$0xff]
    %v1462 = vld [vmem:[#allocation7 + $0xa8] sm:$0xff]
    %v1463 = vld [vmem:[#allocation7 + $0xb0] sm:$0xff]
    %v1464 = vld [vmem:[#allocation7 + $0xb8] sm:$0xff]
    %v1465 = vld [vmem:[#allocation7 + $0xc0] sm:$0xff]
    %v1466 = vld [vmem:[#allocation7 + $0xc8] sm:$0xff]
    %v1467 = vld [vmem:[#allocation7 + $0xd0] sm:$0xff]
    %v1468 = vld [vmem:[#allocation7 + $0xd8] sm:$0xff]
    %v1469 = vld [vmem:[#allocation7 + $0xe0] sm:$0xff]
    %v1470 = vld [vmem:[#allocation7 + $0xe8] sm:$0xff]
    %v1471 = vld [vmem:[#allocation7 + $0xf0] sm:$0xff]
    %v1472 = vld [vmem:[#allocation7 + $0xf8] sm:$0xff]
    %v1505 = vunpack.c.l.b16 %v1441
    %v1506 = vunpack.c.h.b16 %v1441
    %v1507 = vunpack.c.l.b16 %v1442
    %v1508 = vunpack.c.h.b16 %v1442
    %v1509 = vunpack.c.l.b16 %v1443
    %v1510 = vunpack.c.h.b16 %v1443
    %v1511 = vunpack.c.l.b16 %v1444
    %v1512 = vunpack.c.h.b16 %v1444
    %v1513 = vunpack.c.l.b16 %v1445
    %v1514 = vunpack.c.h.b16 %v1445
    %v1515 = vunpack.c.l.b16 %v1446
    %v1516 = vunpack.c.h.b16 %v1446
    %v1517 = vunpack.c.l.b16 %v1447
    %v1518 = vunpack.c.h.b16 %v1447
    %v1519 = vunpack.c.l.b16 %v1448
    %v1520 = vunpack.c.h.b16 %v1448
    %v1521 = vunpack.c.l.b16 %v1449
    %v1522 = vunpack.c.h.b16 %v1449
    %v1523 = vunpack.c.l.b16 %v1450
    %v1524 = vunpack.c.h.b16 %v1450
    %v1525 = vunpack.c.l.b16 %v1451
    %v1526 = vunpack.c.h.b16 %v1451
    %v1527 = vunpack.c.l.b16 %v1452
    %v1528 = vunpack.c.h.b16 %v1452
    %v1529 = vunpack.c.l.b16 %v1453
    %v1530 = vunpack.c.h.b16 %v1453
    %v1531 = vunpack.c.l.b16 %v1454
    %v1532 = vunpack.c.h.b16 %v1454
    %v1533 = vunpack.c.l.b16 %v1455
    %v1534 = vunpack.c.h.b16 %v1455
    %v1535 = vunpack.c.l.b16 %v1456
    %v1536 = vunpack.c.h.b16 %v1456
    %v1537 = vunpack.c.l.b16 %v1457
    %v1538 = vunpack.c.h.b16 %v1457
    %v1539 = vunpack.c.l.b16 %v1458
    %v1540 = vunpack.c.h.b16 %v1458
    %v1541 = vunpack.c.l.b16 %v1459
    %v1542 = vunpack.c.h.b16 %v1459
    %v1543 = vunpack.c.l.b16 %v1460
    %v1544 = vunpack.c.h.b16 %v1460
    %v1545 = vunpack.c.l.b16 %v1461
    %v1546 = vunpack.c.h.b16 %v1461
    %v1547 = vunpack.c.l.b16 %v1462
    %v1548 = vunpack.c.h.b16 %v1462
    %v1549 = vunpack.c.l.b16 %v1463
    %v1550 = vunpack.c.h.b16 %v1463
    %v1551 = vunpack.c.l.b16 %v1464
    %v1552 = vunpack.c.h.b16 %v1464
    %v1553 = vunpack.c.l.b16 %v1465
    %v1554 = vunpack.c.h.b16 %v1465
    %v1555 = vunpack.c.l.b16 %v1466
    %v1556 = vunpack.c.h.b16 %v1466
    %v1557 = vunpack.c.l.b16 %v1467
    %v1558 = vunpack.c.h.b16 %v1467
    %v1559 = vunpack.c.l.b16 %v1468
    %v1560 = vunpack.c.h.b16 %v1468
    %v1561 = vunpack.c.l.b16 %v1469
    %v1562 = vunpack.c.h.b16 %v1469
    %v1563 = vunpack.c.l.b16 %v1470
    %v1564 = vunpack.c.h.b16 %v1470
    %v1565 = vunpack.c.l.b16 %v1471
    %v1566 = vunpack.c.h.b16 %v1471
    %v1567 = vunpack.c.l.b16 %v1472
    %v1568 = vunpack.c.h.b16 %v1472
    %v1569 = vpack.c.b16 %v1509, %v1505
    %v1570 = vpack.c.b16 %v1510, %v1506
    %v1571 = vpack.c.b16 %v1511, %v1507
    %v1572 = vpack.c.b16 %v1512, %v1508
    %v1573 = vpack.c.b16 %v1517, %v1513
    %v1574 = vpack.c.b16 %v1518, %v1514
    %v1575 = vpack.c.b16 %v1519, %v1515
    %v1576 = vpack.c.b16 %v1520, %v1516
    %v1577 = vpack.c.b16 %v1525, %v1521
    %v1578 = vpack.c.b16 %v1526, %v1522
    %v1579 = vpack.c.b16 %v1527, %v1523
    %v1580 = vpack.c.b16 %v1528, %v1524
    %v1581 = vpack.c.b16 %v1533, %v1529
    %v1582 = vpack.c.b16 %v1534, %v1530
    %v1583 = vpack.c.b16 %v1535, %v1531
    %v1584 = vpack.c.b16 %v1536, %v1532
    %v1585 = vpack.c.b16 %v1541, %v1537
    %v1586 = vpack.c.b16 %v1542, %v1538
    %v1587 = vpack.c.b16 %v1543, %v1539
    %v1588 = vpack.c.b16 %v1544, %v1540
    %v1589 = vpack.c.b16 %v1549, %v1545
    %v1590 = vpack.c.b16 %v1550, %v1546
    %v1591 = vpack.c.b16 %v1551, %v1547
    %v1592 = vpack.c.b16 %v1552, %v1548
    %v1593 = vpack.c.b16 %v1557, %v1553
    %v1594 = vpack.c.b16 %v1558, %v1554
    %v1595 = vpack.c.b16 %v1559, %v1555
    %v1596 = vpack.c.b16 %v1560, %v1556
    %v1597 = vpack.c.b16 %v1565, %v1561
    %v1598 = vpack.c.b16 %v1566, %v1562
    %v1599 = vpack.c.b16 %v1567, %v1563
    %v1600 = vpack.c.b16 %v1568, %v1564
    %1633 = vmatpush.bf16.msra.mxu0 %v1597
    %1634 = vmatpush.bf16.msra.mxu0 %v1593
    %1635 = vmatpush.bf16.msra.mxu0 %v1589
    %1636 = vmatpush.bf16.msra.mxu0 %v1585
    %1637 = vmatpush.bf16.msra.mxu0 %v1581
    %1638 = vmatpush.bf16.msra.mxu0 %v1577
    %1639 = vmatpush.bf16.msra.mxu0 %v1573
    %1640 = vmatpush.bf16.msra.mxu0 %v1569
    %1641 = vmatmul.bf16.gmra.mxu0 %v1440
    %v1642 = vpop.f32.mrf.mxu0
    %v1643 = vadd.f32 0.0, %v1642
    %v1644 = vpop.f32.mrf.mxu0
    %1645 = vdwg.mxu0
    %1646 = vmatpush.bf16.msra.mxu0 %v1598
    %1647 = vmatpush.bf16.msra.mxu0 %v1594
    %1648 = vmatpush.bf16.msra.mxu0 %v1590
    %1649 = vmatpush.bf16.msra.mxu0 %v1586
    %1650 = vmatpush.bf16.msra.mxu0 %v1582
    %1651 = vmatpush.bf16.msra.mxu0 %v1578
    %1652 = vmatpush.bf16.msra.mxu0 %v1574
    %1653 = vmatpush.bf16.msra.mxu0 %v1570
    %1654 = vmatmul.bf16.gmra.mxu0 %v1440
    %v1655 = vpop.f32.mrf.mxu0
    %v1656 = vadd.f32 0.0, %v1655
    %v1657 = vpop.f32.mrf.mxu0
    %1658 = vdwg.mxu0
    %1659 = vmatpush.bf16.msra.mxu0 %v1599
    %1660 = vmatpush.bf16.msra.mxu0 %v1595
    %1661 = vmatpush.bf16.msra.mxu0 %v1591
    %1662 = vmatpush.bf16.msra.mxu0 %v1587
    %1663 = vmatpush.bf16.msra.mxu0 %v1583
    %1664 = vmatpush.bf16.msra.mxu0 %v1579
    %1665 = vmatpush.bf16.msra.mxu0 %v1575
    %1666 = vmatpush.bf16.msra.mxu0 %v1571
    %1667 = vmatmul.bf16.gmra.mxu0 %v1440
    %v1668 = vpop.f32.mrf.mxu0
    %v1669 = vadd.f32 0.0, %v1668
    %v1670 = vpop.f32.mrf.mxu0
    %1671 = vdwg.mxu0
    %1672 = vmatpush.bf16.msra.mxu0 %v1600
    %1673 = vmatpush.bf16.msra.mxu0 %v1596
    %1674 = vmatpush.bf16.msra.mxu0 %v1592
    %1675 = vmatpush.bf16.msra.mxu0 %v1588
    %1676 = vmatpush.bf16.msra.mxu0 %v1584
    %1677 = vmatpush.bf16.msra.mxu0 %v1580
    %1678 = vmatpush.bf16.msra.mxu0 %v1576
    %1679 = vmatpush.bf16.msra.mxu0 %v1572
    %1680 = vmatmul.bf16.gmra.mxu0 %v1440
    %v1681 = vpop.f32.mrf.mxu0
    %v1682 = vadd.f32 0.0, %v1681
    %v1683 = vpop.f32.mrf.mxu0
    %1684 = vdwg.mxu0
    %v1685 = vadd.f32 %v1436, %v1643
    %v1686 = vadd.f32 %v1437, %v1656
    %v1687 = vadd.f32 %v1438, %v1669
    %v1688 = vadd.f32 %v1439, %v1682
    %v1689 = vmul.f32 %v1685, 0.5
    %v1690 = vmul.f32 %v1686, 0.5
    %v1691 = vtanh.pop %v1689
    %v1692 = vtanh.pop %v1690
    %v1693 = vadd.f32 %v1691, 1.0
    %v1694 = vadd.f32 %v1692, 1.0
    %v1695 = vmul.f32 %v1693, 0.5
    %v1696 = vmul.f32 %v1694, 0.5
    %v1697 = vtanh.pop %v1687
    %v1698 = vmul.f32 %v1688, 0.5
    %v1699 = vtanh.pop %v1698
    %v1700 = vadd.f32 %v1699, 1.0
    %v1701 = vmul.f32 %v1700, 0.5
    %v1702 = vmul.f32 %v1696, %v1428
    %v1703 = vmul.f32 %v1695, %v1697
    %v1704 = vadd.f32 %v1702, %v1703
    %v1705 = vtanh.pop %v1704
    %v1706 = vmul.f32 %v1701, %v1705
    %s1707 = scalar_lea.vmem [#allocation9], 40
    %1708 = vst [vmem:[%s1707] sm:$0xff] %v1706
    %s1709 = scalar_lea.vmem [#allocation4], 96
    %v1710 = vld [vmem:[%s1709] sm:$0xff]
    %v1711 = vld [vmem:[%s1709 + $0x8] sm:$0xff]
    %v1712 = vunpack.c.l.bf16 %v1710
    %v1713 = vunpack.c.h.bf16 %v1710
    %v1714 = vunpack.c.l.bf16 %v1711
    %v1715 = vunpack.c.h.bf16 %v1711
    %v1716 = vpack.c.bf16 %v1706, %v1706
    %v1717 = vld [vmem:[#allocation7] sm:$0xff]
    %v1718 = vld [vmem:[#allocation7 + $0x8] sm:$0xff]
    %v1719 = vld [vmem:[#allocation7 + $0x10] sm:$0xff]
    %v1720 = vld [vmem:[#allocation7 + $0x18] sm:$0xff]
    %v1721 = vld [vmem:[#allocation7 + $0x20] sm:$0xff]
    %v1722 = vld [vmem:[#allocation7 + $0x28] sm:$0xff]
    %v1723 = vld [vmem:[#allocation7 + $0x30] sm:$0xff]
    %v1724 = vld [vmem:[#allocation7 + $0x38] sm:$0xff]
    %v1725 = vld [vmem:[#allocation7 + $0x40] sm:$0xff]
    %v1726 = vld [vmem:[#allocation7 + $0x48] sm:$0xff]
    %v1727 = vld [vmem:[#allocation7 + $0x50] sm:$0xff]
    %v1728 = vld [vmem:[#allocation7 + $0x58] sm:$0xff]
    %v1729 = vld [vmem:[#allocation7 + $0x60] sm:$0xff]
    %v1730 = vld [vmem:[#allocation7 + $0x68] sm:$0xff]
    %v1731 = vld [vmem:[#allocation7 + $0x70] sm:$0xff]
    %v1732 = vld [vmem:[#allocation7 + $0x78] sm:$0xff]
    %v1733 = vld [vmem:[#allocation7 + $0x80] sm:$0xff]
    %v1734 = vld [vmem:[#allocation7 + $0x88] sm:$0xff]
    %v1735 = vld [vmem:[#allocation7 + $0x90] sm:$0xff]
    %v1736 = vld [vmem:[#allocation7 + $0x98] sm:$0xff]
    %v1737 = vld [vmem:[#allocation7 + $0xa0] sm:$0xff]
    %v1738 = vld [vmem:[#allocation7 + $0xa8] sm:$0xff]
    %v1739 = vld [vmem:[#allocation7 + $0xb0] sm:$0xff]
    %v1740 = vld [vmem:[#allocation7 + $0xb8] sm:$0xff]
    %v1741 = vld [vmem:[#allocation7 + $0xc0] sm:$0xff]
    %v1742 = vld [vmem:[#allocation7 + $0xc8] sm:$0xff]
    %v1743 = vld [vmem:[#allocation7 + $0xd0] sm:$0xff]
    %v1744 = vld [vmem:[#allocation7 + $0xd8] sm:$0xff]
    %v1745 = vld [vmem:[#allocation7 + $0xe0] sm:$0xff]
    %v1746 = vld [vmem:[#allocation7 + $0xe8] sm:$0xff]
    %v1747 = vld [vmem:[#allocation7 + $0xf0] sm:$0xff]
    %v1748 = vld [vmem:[#allocation7 + $0xf8] sm:$0xff]
    %v1781 = vunpack.c.l.b16 %v1717
    %v1782 = vunpack.c.h.b16 %v1717
    %v1783 = vunpack.c.l.b16 %v1718
    %v1784 = vunpack.c.h.b16 %v1718
    %v1785 = vunpack.c.l.b16 %v1719
    %v1786 = vunpack.c.h.b16 %v1719
    %v1787 = vunpack.c.l.b16 %v1720
    %v1788 = vunpack.c.h.b16 %v1720
    %v1789 = vunpack.c.l.b16 %v1721
    %v1790 = vunpack.c.h.b16 %v1721
    %v1791 = vunpack.c.l.b16 %v1722
    %v1792 = vunpack.c.h.b16 %v1722
    %v1793 = vunpack.c.l.b16 %v1723
    %v1794 = vunpack.c.h.b16 %v1723
    %v1795 = vunpack.c.l.b16 %v1724
    %v1796 = vunpack.c.h.b16 %v1724
    %v1797 = vunpack.c.l.b16 %v1725
    %v1798 = vunpack.c.h.b16 %v1725
    %v1799 = vunpack.c.l.b16 %v1726
    %v1800 = vunpack.c.h.b16 %v1726
    %v1801 = vunpack.c.l.b16 %v1727
    %v1802 = vunpack.c.h.b16 %v1727
    %v1803 = vunpack.c.l.b16 %v1728
    %v1804 = vunpack.c.h.b16 %v1728
    %v1805 = vunpack.c.l.b16 %v1729
    %v1806 = vunpack.c.h.b16 %v1729
    %v1807 = vunpack.c.l.b16 %v1730
    %v1808 = vunpack.c.h.b16 %v1730
    %v1809 = vunpack.c.l.b16 %v1731
    %v1810 = vunpack.c.h.b16 %v1731
    %v1811 = vunpack.c.l.b16 %v1732
    %v1812 = vunpack.c.h.b16 %v1732
    %v1813 = vunpack.c.l.b16 %v1733
    %v1814 = vunpack.c.h.b16 %v1733
    %v1815 = vunpack.c.l.b16 %v1734
    %v1816 = vunpack.c.h.b16 %v1734
    %v1817 = vunpack.c.l.b16 %v1735
    %v1818 = vunpack.c.h.b16 %v1735
    %v1819 = vunpack.c.l.b16 %v1736
    %v1820 = vunpack.c.h.b16 %v1736
    %v1821 = vunpack.c.l.b16 %v1737
    %v1822 = vunpack.c.h.b16 %v1737
    %v1823 = vunpack.c.l.b16 %v1738
    %v1824 = vunpack.c.h.b16 %v1738
    %v1825 = vunpack.c.l.b16 %v1739
    %v1826 = vunpack.c.h.b16 %v1739
    %v1827 = vunpack.c.l.b16 %v1740
    %v1828 = vunpack.c.h.b16 %v1740
    %v1829 = vunpack.c.l.b16 %v1741
    %v1830 = vunpack.c.h.b16 %v1741
    %v1831 = vunpack.c.l.b16 %v1742
    %v1832 = vunpack.c.h.b16 %v1742
    %v1833 = vunpack.c.l.b16 %v1743
    %v1834 = vunpack.c.h.b16 %v1743
    %v1835 = vunpack.c.l.b16 %v1744
    %v1836 = vunpack.c.h.b16 %v1744
    %v1837 = vunpack.c.l.b16 %v1745
    %v1838 = vunpack.c.h.b16 %v1745
    %v1839 = vunpack.c.l.b16 %v1746
    %v1840 = vunpack.c.h.b16 %v1746
    %v1841 = vunpack.c.l.b16 %v1747
    %v1842 = vunpack.c.h.b16 %v1747
    %v1843 = vunpack.c.l.b16 %v1748
    %v1844 = vunpack.c.h.b16 %v1748
    %v1845 = vpack.c.b16 %v1785, %v1781
    %v1846 = vpack.c.b16 %v1786, %v1782
    %v1847 = vpack.c.b16 %v1787, %v1783
    %v1848 = vpack.c.b16 %v1788, %v1784
    %v1849 = vpack.c.b16 %v1793, %v1789
    %v1850 = vpack.c.b16 %v1794, %v1790
    %v1851 = vpack.c.b16 %v1795, %v1791
    %v1852 = vpack.c.b16 %v1796, %v1792
    %v1853 = vpack.c.b16 %v1801, %v1797
    %v1854 = vpack.c.b16 %v1802, %v1798
    %v1855 = vpack.c.b16 %v1803, %v1799
    %v1856 = vpack.c.b16 %v1804, %v1800
    %v1857 = vpack.c.b16 %v1809, %v1805
    %v1858 = vpack.c.b16 %v1810, %v1806
    %v1859 = vpack.c.b16 %v1811, %v1807
    %v1860 = vpack.c.b16 %v1812, %v1808
    %v1861 = vpack.c.b16 %v1817, %v1813
    %v1862 = vpack.c.b16 %v1818, %v1814
    %v1863 = vpack.c.b16 %v1819, %v1815
    %v1864 = vpack.c.b16 %v1820, %v1816
    %v1865 = vpack.c.b16 %v1825, %v1821
    %v1866 = vpack.c.b16 %v1826, %v1822
    %v1867 = vpack.c.b16 %v1827, %v1823
    %v1868 = vpack.c.b16 %v1828, %v1824
    %v1869 = vpack.c.b16 %v1833, %v1829
    %v1870 = vpack.c.b16 %v1834, %v1830
    %v1871 = vpack.c.b16 %v1835, %v1831
    %v1872 = vpack.c.b16 %v1836, %v1832
    %v1873 = vpack.c.b16 %v1841, %v1837
    %v1874 = vpack.c.b16 %v1842, %v1838
    %v1875 = vpack.c.b16 %v1843, %v1839
    %v1876 = vpack.c.b16 %v1844, %v1840
    %1909 = vmatpush.bf16.msra.mxu0 %v1873
    %1910 = vmatpush.bf16.msra.mxu0 %v1869
    %1911 = vmatpush.bf16.msra.mxu0 %v1865
    %1912 = vmatpush.bf16.msra.mxu0 %v1861
    %1913 = vmatpush.bf16.msra.mxu0 %v1857
    %1914 = vmatpush.bf16.msra.mxu0 %v1853
    %1915 = vmatpush.bf16.msra.mxu0 %v1849
    %1916 = vmatpush.bf16.msra.mxu0 %v1845
    %1917 = vmatmul.bf16.gmra.mxu0 %v1716
    %v1918 = vpop.f32.mrf.mxu0
    %v1919 = vadd.f32 0.0, %v1918
    %v1920 = vpop.f32.mrf.mxu0
    %1921 = vdwg.mxu0
    %1922 = vmatpush.bf16.msra.mxu0 %v1874
    %1923 = vmatpush.bf16.msra.mxu0 %v1870
    %1924 = vmatpush.bf16.msra.mxu0 %v1866
    %1925 = vmatpush.bf16.msra.mxu0 %v1862
    %1926 = vmatpush.bf16.msra.mxu0 %v1858
    %1927 = vmatpush.bf16.msra.mxu0 %v1854
    %1928 = vmatpush.bf16.msra.mxu0 %v1850
    %1929 = vmatpush.bf16.msra.mxu0 %v1846
    %1930 = vmatmul.bf16.gmra.mxu0 %v1716
    %v1931 = vpop.f32.mrf.mxu0
    %v1932 = vadd.f32 0.0, %v1931
    %v1933 = vpop.f32.mrf.mxu0
    %1934 = vdwg.mxu0
    %1935 = vmatpush.bf16.msra.mxu0 %v1875
    %1936 = vmatpush.bf16.msra.mxu0 %v1871
    %1937 = vmatpush.bf16.msra.mxu0 %v1867
    %1938 = vmatpush.bf16.msra.mxu0 %v1863
    %1939 = vmatpush.bf16.msra.mxu0 %v1859
    %1940 = vmatpush.bf16.msra.mxu0 %v1855
    %1941 = vmatpush.bf16.msra.mxu0 %v1851
    %1942 = vmatpush.bf16.msra.mxu0 %v1847
    %1943 = vmatmul.bf16.gmra.mxu0 %v1716
    %v1944 = vpop.f32.mrf.mxu0
    %v1945 = vadd.f32 0.0, %v1944
    %v1946 = vpop.f32.mrf.mxu0
    %1947 = vdwg.mxu0
    %1948 = vmatpush.bf16.msra.mxu0 %v1876
    %1949 = vmatpush.bf16.msra.mxu0 %v1872
    %1950 = vmatpush.bf16.msra.mxu0 %v1868
    %1951 = vmatpush.bf16.msra.mxu0 %v1864
    %1952 = vmatpush.bf16.msra.mxu0 %v1860
    %1953 = vmatpush.bf16.msra.mxu0 %v1856
    %1954 = vmatpush.bf16.msra.mxu0 %v1852
    %1955 = vmatpush.bf16.msra.mxu0 %v1848
    %1956 = vmatmul.bf16.gmra.mxu0 %v1716
    %v1957 = vpop.f32.mrf.mxu0
    %v1958 = vadd.f32 0.0, %v1957
    %v1959 = vpop.f32.mrf.mxu0
    %1960 = vdwg.mxu0
    %v1961 = vadd.f32 %v1712, %v1919
    %v1962 = vadd.f32 %v1713, %v1932
    %v1963 = vadd.f32 %v1714, %v1945
    %v1964 = vadd.f32 %v1715, %v1958
    %v1965 = vmul.f32 %v1961, 0.5
    %v1966 = vmul.f32 %v1962, 0.5
    %v1967 = vtanh.pop %v1965
    %v1968 = vtanh.pop %v1966
    %v1969 = vadd.f32 %v1967, 1.0
    %v1970 = vadd.f32 %v1968, 1.0
    %v1971 = vmul.f32 %v1969, 0.5
    %v1972 = vmul.f32 %v1970, 0.5
    %v1973 = vtanh.pop %v1963
    %v1974 = vmul.f32 %v1964, 0.5
    %v1975 = vtanh.pop %v1974
    %v1976 = vadd.f32 %v1975, 1.0
    %v1977 = vmul.f32 %v1976, 0.5
    %v1978 = vmul.f32 %v1972, %v1704
    %v1979 = vmul.f32 %v1971, %v1973
    %v1980 = vadd.f32 %v1978, %v1979
    %v1981 = vtanh.pop %v1980
    %v1982 = vmul.f32 %v1977, %v1981
    %s1983 = scalar_lea.vmem [#allocation9], 48
    %1984 = vst [vmem:[%s1983] sm:$0xff] %v1982
    %s1985 = scalar_lea.vmem [#allocation4], 112
    %v1986 = vld [vmem:[%s1985] sm:$0xff]
    %v1987 = vld [vmem:[%s1985 + $0x8] sm:$0xff]
    %v1988 = vunpack.c.l.bf16 %v1986
    %v1989 = vunpack.c.h.bf16 %v1986
    %v1990 = vunpack.c.l.bf16 %v1987
    %v1991 = vunpack.c.h.bf16 %v1987
    %v1992 = vpack.c.bf16 %v1982, %v1982
    %v1993 = vld [vmem:[#allocation7] sm:$0xff]
    %v1994 = vld [vmem:[#allocation7 + $0x8] sm:$0xff]
    %v1995 = vld [vmem:[#allocation7 + $0x10] sm:$0xff]
    %v1996 = vld [vmem:[#allocation7 + $0x18] sm:$0xff]
    %v1997 = vld [vmem:[#allocation7 + $0x20] sm:$0xff]
    %v1998 = vld [vmem:[#allocation7 + $0x28] sm:$0xff]
    %v1999 = vld [vmem:[#allocation7 + $0x30] sm:$0xff]
    %v2000 = vld [vmem:[#allocation7 + $0x38] sm:$0xff]
    %v2001 = vld [vmem:[#allocation7 + $0x40] sm:$0xff]
    %v2002 = vld [vmem:[#allocation7 + $0x48] sm:$0xff]
    %v2003 = vld [vmem:[#allocation7 + $0x50] sm:$0xff]
    %v2004 = vld [vmem:[#allocation7 + $0x58] sm:$0xff]
    %v2005 = vld [vmem:[#allocation7 + $0x60] sm:$0xff]
    %v2006 = vld [vmem:[#allocation7 + $0x68] sm:$0xff]
    %v2007 = vld [vmem:[#allocation7 + $0x70] sm:$0xff]
    %v2008 = vld [vmem:[#allocation7 + $0x78] sm:$0xff]
    %v2009 = vld [vmem:[#allocation7 + $0x80] sm:$0xff]
    %v2010 = vld [vmem:[#allocation7 + $0x88] sm:$0xff]
    %v2011 = vld [vmem:[#allocation7 + $0x90] sm:$0xff]
    %v2012 = vld [vmem:[#allocation7 + $0x98] sm:$0xff]
    %v2013 = vld [vmem:[#allocation7 + $0xa0] sm:$0xff]
    %v2014 = vld [vmem:[#allocation7 + $0xa8] sm:$0xff]
    %v2015 = vld [vmem:[#allocation7 + $0xb0] sm:$0xff]
    %v2016 = vld [vmem:[#allocation7 + $0xb8] sm:$0xff]
    %v2017 = vld [vmem:[#allocation7 + $0xc0] sm:$0xff]
    %v2018 = vld [vmem:[#allocation7 + $0xc8] sm:$0xff]
    %v2019 = vld [vmem:[#allocation7 + $0xd0] sm:$0xff]
    %v2020 = vld [vmem:[#allocation7 + $0xd8] sm:$0xff]
    %v2021 = vld [vmem:[#allocation7 + $0xe0] sm:$0xff]
    %v2022 = vld [vmem:[#allocation7 + $0xe8] sm:$0xff]
    %v2023 = vld [vmem:[#allocation7 + $0xf0] sm:$0xff]
    %v2024 = vld [vmem:[#allocation7 + $0xf8] sm:$0xff]
    %v2057 = vunpack.c.l.b16 %v1993
    %v2058 = vunpack.c.h.b16 %v1993
    %v2059 = vunpack.c.l.b16 %v1994
    %v2060 = vunpack.c.h.b16 %v1994
    %v2061 = vunpack.c.l.b16 %v1995
    %v2062 = vunpack.c.h.b16 %v1995
    %v2063 = vunpack.c.l.b16 %v1996
    %v2064 = vunpack.c.h.b16 %v1996
    %v2065 = vunpack.c.l.b16 %v1997
    %v2066 = vunpack.c.h.b16 %v1997
    %v2067 = vunpack.c.l.b16 %v1998
    %v2068 = vunpack.c.h.b16 %v1998
    %v2069 = vunpack.c.l.b16 %v1999
    %v2070 = vunpack.c.h.b16 %v1999
    %v2071 = vunpack.c.l.b16 %v2000
    %v2072 = vunpack.c.h.b16 %v2000
    %v2073 = vunpack.c.l.b16 %v2001
    %v2074 = vunpack.c.h.b16 %v2001
    %v2075 = vunpack.c.l.b16 %v2002
    %v2076 = vunpack.c.h.b16 %v2002
    %v2077 = vunpack.c.l.b16 %v2003
    %v2078 = vunpack.c.h.b16 %v2003
    %v2079 = vunpack.c.l.b16 %v2004
    %v2080 = vunpack.c.h.b16 %v2004
    %v2081 = vunpack.c.l.b16 %v2005
    %v2082 = vunpack.c.h.b16 %v2005
    %v2083 = vunpack.c.l.b16 %v2006
    %v2084 = vunpack.c.h.b16 %v2006
    %v2085 = vunpack.c.l.b16 %v2007
    %v2086 = vunpack.c.h.b16 %v2007
    %v2087 = vunpack.c.l.b16 %v2008
    %v2088 = vunpack.c.h.b16 %v2008
    %v2089 = vunpack.c.l.b16 %v2009
    %v2090 = vunpack.c.h.b16 %v2009
    %v2091 = vunpack.c.l.b16 %v2010
    %v2092 = vunpack.c.h.b16 %v2010
    %v2093 = vunpack.c.l.b16 %v2011
    %v2094 = vunpack.c.h.b16 %v2011
    %v2095 = vunpack.c.l.b16 %v2012
    %v2096 = vunpack.c.h.b16 %v2012
    %v2097 = vunpack.c.l.b16 %v2013
    %v2098 = vunpack.c.h.b16 %v2013
    %v2099 = vunpack.c.l.b16 %v2014
    %v2100 = vunpack.c.h.b16 %v2014
    %v2101 = vunpack.c.l.b16 %v2015
    %v2102 = vunpack.c.h.b16 %v2015
    %v2103 = vunpack.c.l.b16 %v2016
    %v2104 = vunpack.c.h.b16 %v2016
    %v2105 = vunpack.c.l.b16 %v2017
    %v2106 = vunpack.c.h.b16 %v2017
    %v2107 = vunpack.c.l.b16 %v2018
    %v2108 = vunpack.c.h.b16 %v2018
    %v2109 = vunpack.c.l.b16 %v2019
    %v2110 = vunpack.c.h.b16 %v2019
    %v2111 = vunpack.c.l.b16 %v2020
    %v2112 = vunpack.c.h.b16 %v2020
    %v2113 = vunpack.c.l.b16 %v2021
    %v2114 = vunpack.c.h.b16 %v2021
    %v2115 = vunpack.c.l.b16 %v2022
    %v2116 = vunpack.c.h.b16 %v2022
    %v2117 = vunpack.c.l.b16 %v2023
    %v2118 = vunpack.c.h.b16 %v2023
    %v2119 = vunpack.c.l.b16 %v2024
    %v2120 = vunpack.c.h.b16 %v2024
    %v2121 = vpack.c.b16 %v2061, %v2057
    %v2122 = vpack.c.b16 %v2062, %v2058
    %v2123 = vpack.c.b16 %v2063, %v2059
    %v2124 = vpack.c.b16 %v2064, %v2060
    %v2125 = vpack.c.b16 %v2069, %v2065
    %v2126 = vpack.c.b16 %v2070, %v2066
    %v2127 = vpack.c.b16 %v2071, %v2067
    %v2128 = vpack.c.b16 %v2072, %v2068
    %v2129 = vpack.c.b16 %v2077, %v2073
    %v2130 = vpack.c.b16 %v2078, %v2074
    %v2131 = vpack.c.b16 %v2079, %v2075
    %v2132 = vpack.c.b16 %v2080, %v2076
    %v2133 = vpack.c.b16 %v2085, %v2081
    %v2134 = vpack.c.b16 %v2086, %v2082
    %v2135 = vpack.c.b16 %v2087, %v2083
    %v2136 = vpack.c.b16 %v2088, %v2084
    %v2137 = vpack.c.b16 %v2093, %v2089
    %v2138 = vpack.c.b16 %v2094, %v2090
    %v2139 = vpack.c.b16 %v2095, %v2091
    %v2140 = vpack.c.b16 %v2096, %v2092
    %v2141 = vpack.c.b16 %v2101, %v2097
    %v2142 = vpack.c.b16 %v2102, %v2098
    %v2143 = vpack.c.b16 %v2103, %v2099
    %v2144 = vpack.c.b16 %v2104, %v2100
    %v2145 = vpack.c.b16 %v2109, %v2105
    %v2146 = vpack.c.b16 %v2110, %v2106
    %v2147 = vpack.c.b16 %v2111, %v2107
    %v2148 = vpack.c.b16 %v2112, %v2108
    %v2149 = vpack.c.b16 %v2117, %v2113
    %v2150 = vpack.c.b16 %v2118, %v2114
    %v2151 = vpack.c.b16 %v2119, %v2115
    %v2152 = vpack.c.b16 %v2120, %v2116
    %2185 = vmatpush.bf16.msra.mxu0 %v2149
    %2186 = vmatpush.bf16.msra.mxu0 %v2145
    %2187 = vmatpush.bf16.msra.mxu0 %v2141
    %2188 = vmatpush.bf16.msra.mxu0 %v2137
    %2189 = vmatpush.bf16.msra.mxu0 %v2133
    %2190 = vmatpush.bf16.msra.mxu0 %v2129
    %2191 = vmatpush.bf16.msra.mxu0 %v2125
    %2192 = vmatpush.bf16.msra.mxu0 %v2121
    %2193 = vmatmul.bf16.gmra.mxu0 %v1992
    %v2194 = vpop.f32.mrf.mxu0
    %v2195 = vadd.f32 0.0, %v2194
    %v2196 = vpop.f32.mrf.mxu0
    %2197 = vdwg.mxu0
    %2198 = vmatpush.bf16.msra.mxu0 %v2150
    %2199 = vmatpush.bf16.msra.mxu0 %v2146
    %2200 = vmatpush.bf16.msra.mxu0 %v2142
    %2201 = vmatpush.bf16.msra.mxu0 %v2138
    %2202 = vmatpush.bf16.msra.mxu0 %v2134
    %2203 = vmatpush.bf16.msra.mxu0 %v2130
    %2204 = vmatpush.bf16.msra.mxu0 %v2126
    %2205 = vmatpush.bf16.msra.mxu0 %v2122
    %2206 = vmatmul.bf16.gmra.mxu0 %v1992
    %v2207 = vpop.f32.mrf.mxu0
    %v2208 = vadd.f32 0.0, %v2207
    %v2209 = vpop.f32.mrf.mxu0
    %2210 = vdwg.mxu0
    %2211 = vmatpush.bf16.msra.mxu0 %v2151
    %2212 = vmatpush.bf16.msra.mxu0 %v2147
    %2213 = vmatpush.bf16.msra.mxu0 %v2143
    %2214 = vmatpush.bf16.msra.mxu0 %v2139
    %2215 = vmatpush.bf16.msra.mxu0 %v2135
    %2216 = vmatpush.bf16.msra.mxu0 %v2131
    %2217 = vmatpush.bf16.msra.mxu0 %v2127
    %2218 = vmatpush.bf16.msra.mxu0 %v2123
    %2219 = vmatmul.bf16.gmra.mxu0 %v1992
    %v2220 = vpop.f32.mrf.mxu0
    %v2221 = vadd.f32 0.0, %v2220
    %v2222 = vpop.f32.mrf.mxu0
    %2223 = vdwg.mxu0
    %2224 = vmatpush.bf16.msra.mxu0 %v2152
    %2225 = vmatpush.bf16.msra.mxu0 %v2148
    %2226 = vmatpush.bf16.msra.mxu0 %v2144
    %2227 = vmatpush.bf16.msra.mxu0 %v2140
    %2228 = vmatpush.bf16.msra.mxu0 %v2136
    %2229 = vmatpush.bf16.msra.mxu0 %v2132
    %2230 = vmatpush.bf16.msra.mxu0 %v2128
    %2231 = vmatpush.bf16.msra.mxu0 %v2124
    %2232 = vmatmul.bf16.gmra.mxu0 %v1992
    %v2233 = vpop.f32.mrf.mxu0
    %v2234 = vadd.f32 0.0, %v2233
    %v2235 = vpop.f32.mrf.mxu0
    %2236 = vdwg.mxu0
    %v2237 = vadd.f32 %v1988, %v2195
    %v2238 = vadd.f32 %v1989, %v2208
    %v2239 = vadd.f32 %v1990, %v2221
    %v2240 = vadd.f32 %v1991, %v2234
    %v2241 = vmul.f32 %v2237, 0.5
    %v2242 = vmul.f32 %v2238, 0.5
    %v2243 = vtanh.pop %v2241
    %v2244 = vtanh.pop %v2242
    %v2245 = vadd.f32 %v2243, 1.0
    %v2246 = vadd.f32 %v2244, 1.0
    %v2247 = vmul.f32 %v2245, 0.5
    %v2248 = vmul.f32 %v2246, 0.5
    %v2249 = vtanh.pop %v2239
    %v2250 = vmul.f32 %v2240, 0.5
    %v2251 = vtanh.pop %v2250
    %v2252 = vadd.f32 %v2251, 1.0
    %v2253 = vmul.f32 %v2252, 0.5
    %v2254 = vmul.f32 %v2248, %v1980
    %v2255 = vmul.f32 %v2247, %v2249
    %v2256 = vadd.f32 %v2254, %v2255
    %v2257 = vtanh.pop %v2256
    %v2258 = vmul.f32 %v2253, %v2257
    %s2259 = scalar_lea.vmem [#allocation9], 56
    %2260 = vst [vmem:[%s2259] sm:$0xff] %v2258
    %2261 = vst [vmem:[#allocation2] sm:$0xff] %v2258
    %2262 = vst [vmem:[#allocation3] sm:$0xff] %v2256
    // Predicated region
    $region22: #{tpu_custom_call.1} parent=1 // pred_check
      %p2263 = pneg %p47
    $region23: #{tpu_custom_call.1} parent=1 // pred_check_branch
      %2265 = sbr.rel (%p2263) target = $region25
    $region24: #{tpu_custom_call.1} parent=1 // pred_region
      %2266 = vst [vmem:[#allocation10] sm:$0xff] %v2256
    $region25: #{tpu_custom_call.1} parent=1 // pred_fallthru
      _
    // Predicated region
    $region26: #{tpu_custom_call.1} parent=1 // pred_check
      _
    $region27: #{tpu_custom_call.1} parent=1 // pred_check_branch
      %2268 = sbr.rel (0) target = $region29
    $region28: #{tpu_custom_call.1} parent=1 // pred_region
      %2270 = vsyncadd [#allocation6], 0
      %s2271 = sshll.u32 [#allocation9], 4
      %s2272 = int_to_ptr.vmem [resolvable:$true] %s2271
      %s2273 = sshll.u32 %s2, 4
      %s2274 = int_to_ptr.hbm [resolvable:$true] %s2273
      %2279 = dma.vmem_to_hbm [thread:$0]  %s2272, 1024, %s2274, [#allocation6], 128, 128, 8
    $region29: #{tpu_custom_call.1} parent=1 // pred_fallthru
      _
    // Predicated region
    $region30: #{tpu_custom_call.1} parent=1 // pred_check
      _
    $region31: #{tpu_custom_call.1} parent=1 // pred_check_branch
      %2281 = sbr.rel (0) target = $region33
    $region32: #{tpu_custom_call.1} parent=1 // pred_region
      %2283 = vsyncadd [#allocation11], 0
      %s2285 = sshll.u32 [#allocation10], 4
      %s2286 = int_to_ptr.vmem [resolvable:$true] %s2285
      %s2287 = sshll.u32 %s3, 4
      %s2288 = int_to_ptr.hbm [resolvable:$true] %s2287
      %2290 = dma.vmem_to_hbm [thread:$0]  %s2286, 128, %s2288, [#allocation11]
    $region33: #{tpu_custom_call.1} parent=1 // pred_fallthru
      _
    // Predicated region
    $region34: #{tpu_custom_call.1} parent=1 // pred_check
      _
    $region35: #{tpu_custom_call.1} parent=1 // pred_check_branch
      %2292 = sbr.rel (0) target = $region37
    $region36: #{tpu_custom_call.1} parent=1 // pred_region
      %2294 = dma.done [#allocation6], 1024
    $region37: #{tpu_custom_call.1} parent=1 // pred_fallthru
      _
    // Predicated region
    $region38: #{tpu_custom_call.1} parent=1 // pred_check
      _
    $region39: #{tpu_custom_call.1} parent=1 // pred_check_branch
      %2296 = sbr.rel (0) target = $region41
    $region40: #{tpu_custom_call.1} parent=1 // pred_region
      %2298 = dma.done [#allocation11], 128
    $region41: #{tpu_custom_call.1} parent=1 // pred_fallthru
      _
    %2299 = vsyncpa [#allocation5], 1
    %2300 = vsyncpa [#allocation8], 1
    %2301 = vsyncpa [#allocation6], 1
    %2302 = vsyncpa [#allocation11], 1

</llo_original>
